<compile_context>
chip_gen: v5e
topology: v5e:2x2
jax: 0.10.0
libtpu: 0.0.40
codegen_flags: <defaults>
</compile_context>

<pallas_src>
import jax
import jax.numpy as jnp
from jax import lax
from jax.experimental import pallas as pl
from jax.experimental.pallas import tpu as pltpu

EPS = 1e-5


# ----------------------------------------------------------------------------------
# Fused kernel: convInt (step 0) -> numBlocks x ResNetBlock (one per grid step)
#               -> convOut + LogSoftmax (last step)
# ----------------------------------------------------------------------------------
def _anglenet_fused_kernel(xs_ref, wi_ref, bi_ref, w1_ref, w2_ref, wh_ref, bh_ref,
                           out_ref, act_ref):
    i = pl.program_id(0)
    nb = pl.num_programs(0)
    n, s, c = act_ref.shape

    @pl.when(i == 0)
    def _seed():
        # convInt as an im2col matmul: (N*S, KW) @ (KW, C) + bias, channels-last.
        # The convInt bias is kept (it feeds every residual path); block conv biases
        # are omitted below because InstanceNorm's mean subtraction cancels them exactly.
        y = jnp.dot(xs_ref[...], wi_ref[...],
                    preferred_element_type=jnp.float32) + bi_ref[...]
        act_ref[...] = y.reshape(n, s, c)

    def conv_in_bn_relu(h, w):
        # 1x1 conv (bias-free) -> InstanceNorm -> BatchNorm(train, affine=False) -> ReLU,
        # fused into one elementwise pass:
        #   IN:  (y - mu_nc) * rsqrt(var_nc + eps)
        #   BN:  batch mean of the IN output == 0 exactly;
        #        batch var per channel == mean_n(var_nc / (var_nc + eps))
        # Matmul operands stay f32 (bf16 breaks the 5e-4 tolerance over the residual chain).
        y = jnp.dot(h.reshape(n * s, c), w,
                    preferred_element_type=jnp.float32).reshape(n, s, c)
        mu = jnp.mean(y, axis=1, keepdims=True)                                   # (n,1,c)
        var = jnp.maximum(jnp.mean(y * y, axis=1, keepdims=True) - mu * mu, 0.0)  # (n,1,c)
        inv_in = lax.rsqrt(var + EPS)                                             # (n,1,c)
        bvar = jnp.mean(var * inv_in * inv_in, axis=0, keepdims=True)             # (1,1,c)
        scale = inv_in * lax.rsqrt(bvar + EPS)
        return jnp.maximum((y - mu) * scale, 0.0)

    # One ResNetBlock per grid step, using this step's streamed weights.
    h = conv_in_bn_relu(act_ref[...], w1_ref[0])
    h = conv_in_bn_relu(h, w2_ref[0])
    # Residual: re-read the scratch instead of keeping the identity live across both convs.
    act_ref[...] = act_ref[...] + h

    @pl.when(i == nb - 1)
    def _head():
        # convOut (1x1) + LogSoftmax over the class axis, on the full slab (slicing
        # width-0 commutes with both and is done by the wrapper on the tiny output).
        logits = jnp.dot(act_ref[...].reshape(n * s, c), wh_ref[...],
                         preferred_element_type=jnp.float32) + bh_ref[...]
        m = jnp.max(logits, axis=-1, keepdims=True)
        z = logits - m
        lse = jnp.log(jnp.sum(jnp.exp(z), axis=-1, keepdims=True))
        out_ref[...] = (z - lse).astype(out_ref.dtype)


# ----------------------------------------------------------------------------------
# Wrapper
# ----------------------------------------------------------------------------------
def anglenet_pallas(x, params):
    """Full AngleNet forward in one pallas_call.  x: (N, 1, numData, W) NCHW
    -> (N, 9, numData) log-probs (matches the PyTorch module)."""
    N, _, H, W = x.shape
    wi_t = params["convInt_w"]                                  # (C, 1, 1, KW)
    C, KW = wi_t.shape[0], wi_t.shape[3]
    Wout = W - KW + 1
    S = H * Wout

    # im2col for the (1,5) conv, flattened to (N*S, KW); tiny, built by XLA.
    x2 = x[:, 0]                                                # (N, H, W)
    xs = jnp.stack([x2[:, :, k:k + Wout] for k in range(KW)],
                   axis=-1).reshape(N * S, KW)
    wi = jnp.transpose(wi_t[:, 0, 0, :], (1, 0))                # (KW, C)
    bi = params["convInt_b"].reshape(1, C)

    blocks = params["blocks"]
    nb = len(blocks)
    # Stacked, pre-transposed block weights (Cin, Cout); biases dropped on purpose
    # (cancelled exactly by InstanceNorm).
    w1_all = jnp.stack([jnp.transpose(b["w1"][:, :, 0, 0], (1, 0)) for b in blocks], 0)
    w2_all = jnp.stack([jnp.transpose(b["w2"][:, :, 0, 0], (1, 0)) for b in blocks], 0)

    wh = jnp.transpose(params["convOut_w"][:, :, 0, 0], (1, 0))  # (C, 9)
    NC = wh.shape[1]
    bh = params["convOut_b"].reshape(1, NC)

    out_full = pl.pallas_call(
        _anglenet_fused_kernel,
        out_shape=jax.ShapeDtypeStruct((N * S, NC), jnp.float32),
        grid=(nb,),
        in_specs=[
            pl.BlockSpec((N * S, KW), lambda i: (0, 0)),          # im2col slab (resident)
            pl.BlockSpec((KW, C), lambda i: (0, 0)),              # convInt weight
            pl.BlockSpec((1, C), lambda i: (0, 0)),               # convInt bias
            pl.BlockSpec((1, C, C), lambda i: (i, 0, 0)),         # block conv1 weights (streamed)
            pl.BlockSpec((1, C, C), lambda i: (i, 0, 0)),         # block conv2 weights (streamed)
            pl.BlockSpec((C, NC), lambda i: (0, 0)),              # convOut weight
            pl.BlockSpec((1, NC), lambda i: (0, 0)),              # convOut bias
        ],
        out_specs=pl.BlockSpec((N * S, NC), lambda i: (0, 0)),    # written only at the last step
        scratch_shapes=[pltpu.VMEM((N, S, C), jnp.float32)],      # resident activation
        compiler_params=pltpu.CompilerParams(
            # The block axis is a sequential dependency through the activation scratch.
            dimension_semantics=("arbitrary",),
            # Demo working set is <1 MiB; for scaled-up S re-derive per generation
            # (<= ~48 MiB on v7x's 64 MiB physical VMEM, larger on v6e/v5e's 128 MiB).
            vmem_limit_bytes=32 * 1024 * 1024,
        ),
    )(xs, wi, bi, w1_all, w2_all, wh, bh)

    # PyTorch does convOut then [:, :, :, 0]; both commute with the slice, so take the
    # width-0 rows of the in-kernel result and transpose to (N, 9, numData).
    logp = out_full.reshape(N, H, Wout, NC)[:, :, 0, :]           # (N, H, 9)
    return jnp.transpose(logp, (0, 2, 1))


# ----------------------------------------------------------------------------------
# Pure-JAX reference (mirrors the PyTorch module exactly, biases included)
# ----------------------------------------------------------------------------------
def anglenet_reference(x, params):
    y = lax.conv_general_dilated(x, params["convInt_w"], window_strides=(1, 1),
                                 padding="VALID",
                                 dimension_numbers=("NCHW", "OIHW", "NCHW"))
    y = y + params["convInt_b"][None, :, None, None]

    def conv_norm(z, wc, bc):
        z = jnp.einsum("nchw,oc->nohw", z, wc[:, :, 0, 0]) + bc[None, :, None, None]
        mu = jnp.mean(z, axis=(2, 3), keepdims=True)
        var = jnp.mean((z - mu) ** 2, axis=(2, 3), keepdims=True)
        z = (z - mu) / jnp.sqrt(var + EPS)
        bmu = jnp.mean(z, axis=(0, 2, 3), keepdims=True)
        bvar = jnp.mean((z - bmu) ** 2, axis=(0, 2, 3), keepdims=True)
        z = (z - bmu) / jnp.sqrt(bvar + EPS)
        return jnp.maximum(z, 0.0)

    for blk in params["blocks"]:
        identity = y
        y = conv_norm(y, blk["w1"], blk["b1"])
        y = conv_norm(y, blk["w2"], blk["b2"])
        y = y + identity

    z = (jnp.einsum("nchw,oc->nohw", y, params["convOut_w"][:, :, 0, 0])
         + params["convOut_b"][None, :, None, None])
    z = z[:, :, :, 0]
    return jax.nn.log_softmax(z, axis=1)


# ----------------------------------------------------------------------------------
if __name__ == "__main__":
    # Small shapes consistent with the module: NCHW input (N, 1, numData, W),
    # inter_channel = 128 (module default), 9 output classes.
    N, H, W = 2, 16, 12          # convInt (1,5) -> effective width 8
    C = 128                      # inter_channel
    NUM_BLOCKS = 3               # small depth for the demo (module default is 20)
    NUM_CLASSES = 9

    key = jax.random.PRNGKey(0)
    keys = list(jax.random.split(key, 5 + 4 * NUM_BLOCKS))
    kx, kwi, kbi, kwo, kbo = keys[:5]
    blk_keys = keys[5:]

    x = jax.random.normal(kx, (N, 1, H, W), dtype=jnp.float32)
    params = {
        "convInt_w": jax.random.normal(kwi, (C, 1, 1, 5), dtype=jnp.float32) * 0.3,
        "convInt_b": jax.random.normal(kbi, (C,), dtype=jnp.float32) * 0.1,
        "convOut_w": jax.random.normal(kwo, (NUM_CLASSES, C, 1, 1), dtype=jnp.float32) * 0.05,
        "convOut_b": jax.random.normal(kbo, (NUM_CLASSES,), dtype=jnp.float32) * 0.05,
        "blocks": [],
    }
    for i in range(NUM_BLOCKS):
        k1, k2, k3, k4 = blk_keys[4 * i: 4 * i + 4]
        params["blocks"].append({
            "w1": jax.random.normal(k1, (C, C, 1, 1), dtype=jnp.float32) * 0.05,
            "b1": jax.random.normal(k2, (C,), dtype=jnp.float32) * 0.05,
            "w2": jax.random.normal(k3, (C, C, 1, 1), dtype=jnp.float32) * 0.05,
            "b2": jax.random.normal(k4, (C,), dtype=jnp.float32) * 0.05,
        })

    out = jax.block_until_ready(jax.jit(anglenet_pallas)(x, params))
    ref = jax.block_until_ready(jax.jit(anglenet_reference)(x, params))

    assert out.shape == (N, NUM_CLASSES, H), out.shape
    max_err = float(jnp.max(jnp.abs(out - ref)))
    assert jnp.allclose(out, ref, atol=5e-4, rtol=5e-4), \
        f"mismatch vs reference, max abs err {max_err}"

    print("KERNEL_OK")
</pallas_src>

<mosaic_0001>
module attributes {stable_mosaic.version = 11 : i64} {
  func.func @_anglenet_fused_kernel(%arg0: i32, %arg1: memref<256x5xf32, #tpu.memory_space<vmem>>, %arg2: memref<5x128xf32, #tpu.memory_space<vmem>>, %arg3: memref<1x128xf32, #tpu.memory_space<vmem>>, %arg4: memref<1x128x128xf32, #tpu.memory_space<vmem>>, %arg5: memref<1x128x128xf32, #tpu.memory_space<vmem>>, %arg6: memref<128x9xf32, #tpu.memory_space<vmem>>, %arg7: memref<1x9xf32, #tpu.memory_space<vmem>>, %arg8: memref<256x9xf32, #tpu.memory_space<vmem>>, %arg9: memref<2x128x128xf32, #tpu.memory_space<vmem>>) attributes {dimension_semantics = [#tpu.dimension_semantics<arbitrary>], iteration_bounds = array<i64: 3>, scalar_prefetch = 0 : i64, scratch_operands = 1 : i64, tpu.core_type = #tpu.core_type<tc>, window_params = [{pipeline_mode = #tpu.pipeline_mode<synchronous>, transform_indices = @transform_0, window_bounds = array<i64: 256, 5>}, {pipeline_mode = #tpu.pipeline_mode<synchronous>, transform_indices = @transform_1, window_bounds = array<i64: 5, 128>}, {pipeline_mode = #tpu.pipeline_mode<synchronous>, transform_indices = @transform_2, window_bounds = array<i64: 1, 128>}, {transform_indices = @transform_3, window_bounds = array<i64: 1, 128, 128>}, {transform_indices = @transform_4, window_bounds = array<i64: 1, 128, 128>}, {pipeline_mode = #tpu.pipeline_mode<synchronous>, transform_indices = @transform_5, window_bounds = array<i64: 128, 9>}, {pipeline_mode = #tpu.pipeline_mode<synchronous>, transform_indices = @transform_6, window_bounds = array<i64: 1, 9>}, {pipeline_mode = #tpu.pipeline_mode<synchronous>, transform_indices = @transform_7, window_bounds = array<i64: 256, 9>}]} {
    %c0_i32 = arith.constant 0 : i32
    %0 = arith.cmpi eq, %arg0, %c0_i32 : i32
    %1 = arith.extui %0 : i1 to i32
    %c0_i32_0 = arith.constant 0 : i32
    %2 = arith.cmpi ne, %1, %c0_i32_0 : i32
    scf.if %2 {
      %c0_37 = arith.constant 0 : index
      %c0_38 = arith.constant 0 : index
      %86 = vector.load %arg1[%c0_37, %c0_38] : memref<256x5xf32, #tpu.memory_space<vmem>>, vector<256x5xf32>
      %c0_39 = arith.constant 0 : index
      %c0_40 = arith.constant 0 : index
      %87 = vector.load %arg2[%c0_39, %c0_40] : memref<5x128xf32, #tpu.memory_space<vmem>>, vector<5x128xf32>
      %cst_41 = arith.constant dense<0.000000e+00> : vector<256x128xf32>
      %88 = tpu.matmul %86, %87, %cst_41 {dimension_numbers = #tpu.dot_dimension_numbers<[1], [0], [0], [1], [0, 0, 1, 1], [], []>} : vector<256x5xf32>, vector<5x128xf32>, vector<256x128xf32> -> vector<256x128xf32>
      %c0_42 = arith.constant 0 : index
      %c0_43 = arith.constant 0 : index
      %89 = vector.load %arg3[%c0_42, %c0_43] : memref<1x128xf32, #tpu.memory_space<vmem>>, vector<1x128xf32>
      %90 = vector.broadcast %89 : vector<1x128xf32> to vector<256x128xf32>
      %91 = arith.addf %88, %90 : vector<256x128xf32>
      %92 = vector.shape_cast %91 : vector<256x128xf32> to vector<2x128x128xf32>
      %c0_44 = arith.constant 0 : index
      %c0_45 = arith.constant 0 : index
      %c0_46 = arith.constant 0 : index
      %93 = vector.load %arg9[%c0_44, %c0_45, %c0_46] : memref<2x128x128xf32, #tpu.memory_space<vmem>>, vector<2x128x128xf32>
      tpu.vector_store %arg9[%c0_44, %c0_45, %c0_46], %92 {strides = array<i32>} : memref<2x128x128xf32, #tpu.memory_space<vmem>>, vector<2x128x128xf32>,
    } else {
    }
    %c0 = arith.constant 0 : index
    %c0_1 = arith.constant 0 : index
    %c0_2 = arith.constant 0 : index
    %3 = vector.load %arg9[%c0, %c0_1, %c0_2] : memref<2x128x128xf32, #tpu.memory_space<vmem>>, vector<2x128x128xf32>
    %c0_3 = arith.constant 0 : index
    %c0_4 = arith.constant 0 : index
    %c0_5 = arith.constant 0 : index
    %4 = vector.load %arg4[%c0_3, %c0_4, %c0_5] : memref<1x128x128xf32, #tpu.memory_space<vmem>>, vector<1x128x128xf32>
    %5 = vector.shape_cast %4 : vector<1x128x128xf32> to vector<128x128xf32>
    %6 = vector.shape_cast %3 : vector<2x128x128xf32> to vector<256x128xf32>
    %cst = arith.constant dense<0.000000e+00> : vector<256x128xf32>
    %7 = tpu.matmul %6, %5, %cst {dimension_numbers = #tpu.dot_dimension_numbers<[1], [0], [0], [1], [0, 0, 1, 1], [], []>} : vector<256x128xf32>, vector<128x128xf32>, vector<256x128xf32> -> vector<256x128xf32>
    %8 = vector.shape_cast %7 : vector<256x128xf32> to vector<2x128x128xf32>
    %cst_6 = arith.constant dense<0.000000e+00> : vector<2x128xf32>
    %9 = vector.multi_reduction <add>, %8, %cst_6 [1] : vector<2x128x128xf32> to vector<2x128xf32>
    %10 = vector.shape_cast %9 : vector<2x128xf32> to vector<2x1x128xf32>
    %cst_7 = arith.constant 1.280000e+02 : f32
    %11 = vector.broadcast %cst_7 : f32 to vector<2x1x128xf32>
    %12 = arith.divf %10, %11 : vector<2x1x128xf32>
    %13 = arith.mulf %8, %8 : vector<2x128x128xf32>
    %cst_8 = arith.constant dense<0.000000e+00> : vector<2x128xf32>
    %14 = vector.multi_reduction <add>, %13, %cst_8 [1] : vector<2x128x128xf32> to vector<2x128xf32>
    %15 = vector.shape_cast %14 : vector<2x128xf32> to vector<2x1x128xf32>
    %cst_9 = arith.constant 1.280000e+02 : f32
    %16 = vector.broadcast %cst_9 : f32 to vector<2x1x128xf32>
    %17 = arith.divf %15, %16 : vector<2x1x128xf32>
    %18 = arith.mulf %12, %12 : vector<2x1x128xf32>
    %19 = arith.subf %17, %18 : vector<2x1x128xf32>
    %cst_10 = arith.constant 0.000000e+00 : f32
    %20 = vector.broadcast %cst_10 : f32 to vector<2x1x128xf32>
    %21 = arith.maximumf %19, %20 : vector<2x1x128xf32>
    %cst_11 = arith.constant 9.99999974E-6 : f32
    %22 = vector.broadcast %cst_11 : f32 to vector<2x1x128xf32>
    %23 = arith.addf %21, %22 : vector<2x1x128xf32>
    %24 = math.rsqrt %23 : vector<2x1x128xf32>
    %25 = arith.mulf %21, %24 : vector<2x1x128xf32>
    %26 = arith.mulf %25, %24 : vector<2x1x128xf32>
    %cst_12 = arith.constant dense<0.000000e+00> : vector<1x128xf32>
    %27 = vector.multi_reduction <add>, %26, %cst_12 [0] : vector<2x1x128xf32> to vector<1x128xf32>
    %28 = vector.shape_cast %27 : vector<1x128xf32> to vector<1x1x128xf32>
    %cst_13 = arith.constant 2.000000e+00 : f32
    %29 = vector.broadcast %cst_13 : f32 to vector<1x1x128xf32>
    %30 = arith.divf %28, %29 : vector<1x1x128xf32>
    %cst_14 = arith.constant 9.99999974E-6 : f32
    %31 = vector.broadcast %cst_14 : f32 to vector<1x1x128xf32>
    %32 = arith.addf %30, %31 : vector<1x1x128xf32>
    %33 = math.rsqrt %32 : vector<1x1x128xf32>
    %34 = vector.broadcast %33 : vector<1x1x128xf32> to vector<2x1x128xf32>
    %35 = arith.mulf %24, %34 : vector<2x1x128xf32>
    %36 = vector.broadcast %12 : vector<2x1x128xf32> to vector<2x128x128xf32>
    %37 = arith.subf %8, %36 : vector<2x128x128xf32>
    %38 = vector.broadcast %35 : vector<2x1x128xf32> to vector<2x128x128xf32>
    %39 = arith.mulf %37, %38 : vector<2x128x128xf32>
    %cst_15 = arith.constant 0.000000e+00 : f32
    %40 = vector.broadcast %cst_15 : f32 to vector<2x128x128xf32>
    %41 = arith.maximumf %39, %40 : vector<2x128x128xf32>
    %c0_16 = arith.constant 0 : index
    %c0_17 = arith.constant 0 : index
    %c0_18 = arith.constant 0 : index
    %42 = vector.load %arg5[%c0_16, %c0_17, %c0_18] : memref<1x128x128xf32, #tpu.memory_space<vmem>>, vector<1x128x128xf32>
    %43 = vector.shape_cast %42 : vector<1x128x128xf32> to vector<128x128xf32>
    %44 = vector.shape_cast %41 : vector<2x128x128xf32> to vector<256x128xf32>
    %cst_19 = arith.constant dense<0.000000e+00> : vector<256x128xf32>
    %45 = tpu.matmul %44, %43, %cst_19 {dimension_numbers = #tpu.dot_dimension_numbers<[1], [0], [0], [1], [0, 0, 1, 1], [], []>} : vector<256x128xf32>, vector<128x128xf32>, vector<256x128xf32> -> vector<256x128xf32>
    %46 = vector.shape_cast %45 : vector<256x128xf32> to vector<2x128x128xf32>
    %cst_20 = arith.constant dense<0.000000e+00> : vector<2x128xf32>
    %47 = vector.multi_reduction <add>, %46, %cst_20 [1] : vector<2x128x128xf32> to vector<2x128xf32>
    %48 = vector.shape_cast %47 : vector<2x128xf32> to vector<2x1x128xf32>
    %cst_21 = arith.constant 1.280000e+02 : f32
    %49 = vector.broadcast %cst_21 : f32 to vector<2x1x128xf32>
    %50 = arith.divf %48, %49 : vector<2x1x128xf32>
    %51 = arith.mulf %46, %46 : vector<2x128x128xf32>
    %cst_22 = arith.constant dense<0.000000e+00> : vector<2x128xf32>
    %52 = vector.multi_reduction <add>, %51, %cst_22 [1] : vector<2x128x128xf32> to vector<2x128xf32>
    %53 = vector.shape_cast %52 : vector<2x128xf32> to vector<2x1x128xf32>
    %cst_23 = arith.constant 1.280000e+02 : f32
    %54 = vector.broadcast %cst_23 : f32 to vector<2x1x128xf32>
    %55 = arith.divf %53, %54 : vector<2x1x128xf32>
    %56 = arith.mulf %50, %50 : vector<2x1x128xf32>
    %57 = arith.subf %55, %56 : vector<2x1x128xf32>
    %cst_24 = arith.constant 0.000000e+00 : f32
    %58 = vector.broadcast %cst_24 : f32 to vector<2x1x128xf32>
    %59 = arith.maximumf %57, %58 : vector<2x1x128xf32>
    %cst_25 = arith.constant 9.99999974E-6 : f32
    %60 = vector.broadcast %cst_25 : f32 to vector<2x1x128xf32>
    %61 = arith.addf %59, %60 : vector<2x1x128xf32>
    %62 = math.rsqrt %61 : vector<2x1x128xf32>
    %63 = arith.mulf %59, %62 : vector<2x1x128xf32>
    %64 = arith.mulf %63, %62 : vector<2x1x128xf32>
    %cst_26 = arith.constant dense<0.000000e+00> : vector<1x128xf32>
    %65 = vector.multi_reduction <add>, %64, %cst_26 [0] : vector<2x1x128xf32> to vector<1x128xf32>
    %66 = vector.shape_cast %65 : vector<1x128xf32> to vector<1x1x128xf32>
    %cst_27 = arith.constant 2.000000e+00 : f32
    %67 = vector.broadcast %cst_27 : f32 to vector<1x1x128xf32>
    %68 = arith.divf %66, %67 : vector<1x1x128xf32>
    %cst_28 = arith.constant 9.99999974E-6 : f32
    %69 = vector.broadcast %cst_28 : f32 to vector<1x1x128xf32>
    %70 = arith.addf %68, %69 : vector<1x1x128xf32>
    %71 = math.rsqrt %70 : vector<1x1x128xf32>
    %72 = vector.broadcast %71 : vector<1x1x128xf32> to vector<2x1x128xf32>
    %73 = arith.mulf %62, %72 : vector<2x1x128xf32>
    %74 = vector.broadcast %50 : vector<2x1x128xf32> to vector<2x128x128xf32>
    %75 = arith.subf %46, %74 : vector<2x128x128xf32>
    %76 = vector.broadcast %73 : vector<2x1x128xf32> to vector<2x128x128xf32>
    %77 = arith.mulf %75, %76 : vector<2x128x128xf32>
    %cst_29 = arith.constant 0.000000e+00 : f32
    %78 = vector.broadcast %cst_29 : f32 to vector<2x128x128xf32>
    %79 = arith.maximumf %77, %78 : vector<2x128x128xf32>
    %c0_30 = arith.constant 0 : index
    %c0_31 = arith.constant 0 : index
    %c0_32 = arith.constant 0 : index
    %80 = vector.load %arg9[%c0_30, %c0_31, %c0_32] : memref<2x128x128xf32, #tpu.memory_space<vmem>>, vector<2x128x128xf32>
    %81 = arith.addf %80, %79 : vector<2x128x128xf32>
    %c0_33 = arith.constant 0 : index
    %c0_34 = arith.constant 0 : index
    %c0_35 = arith.constant 0 : index
    %82 = vector.load %arg9[%c0_33, %c0_34, %c0_35] : memref<2x128x128xf32, #tpu.memory_space<vmem>>, vector<2x128x128xf32>
    tpu.vector_store %arg9[%c0_33, %c0_34, %c0_35], %81 {strides = array<i32>} : memref<2x128x128xf32, #tpu.memory_space<vmem>>, vector<2x128x128xf32>,
    %c2_i32 = arith.constant 2 : i32
    %83 = arith.cmpi eq, %arg0, %c2_i32 : i32
    %84 = arith.extui %83 : i1 to i32
    %c0_i32_36 = arith.constant 0 : i32
    %85 = arith.cmpi ne, %84, %c0_i32_36 : i32
    scf.if %85 {
      %c0_37 = arith.constant 0 : index
      %c0_38 = arith.constant 0 : index
      %c0_39 = arith.constant 0 : index
      %86 = vector.load %arg9[%c0_37, %c0_38, %c0_39] : memref<2x128x128xf32, #tpu.memory_space<vmem>>, vector<2x128x128xf32>
      %87 = vector.shape_cast %86 : vector<2x128x128xf32> to vector<256x128xf32>
      %c0_40 = arith.constant 0 : index
      %c0_41 = arith.constant 0 : index
      %88 = vector.load %arg6[%c0_40, %c0_41] : memref<128x9xf32, #tpu.memory_space<vmem>>, vector<128x9xf32>
      %cst_42 = arith.constant dense<0.000000e+00> : vector<256x9xf32>
      %89 = tpu.matmul %87, %88, %cst_42 {dimension_numbers = #tpu.dot_dimension_numbers<[1], [0], [0], [1], [0, 0, 1, 1], [], []>} : vector<256x128xf32>, vector<128x9xf32>, vector<256x9xf32> -> vector<256x9xf32>
      %c0_43 = arith.constant 0 : index
      %c0_44 = arith.constant 0 : index
      %90 = vector.load %arg7[%c0_43, %c0_44] : memref<1x9xf32, #tpu.memory_space<vmem>>, vector<1x9xf32>
      %91 = vector.broadcast %90 : vector<1x9xf32> to vector<256x9xf32>
      %92 = arith.addf %89, %91 : vector<256x9xf32>
      %cst_45 = arith.constant dense<0xFF800000> : vector<256xf32>
      %93 = vector.multi_reduction <maximumf>, %92, %cst_45 [1] : vector<256x9xf32> to vector<256xf32>
      %94 = vector.shape_cast %93 : vector<256xf32> to vector<256x1xf32>
      %95 = vector.broadcast %94 : vector<256x1xf32> to vector<256x9xf32>
      %96 = arith.subf %92, %95 : vector<256x9xf32>
      %97 = math.exp %96 : vector<256x9xf32>
      %cst_46 = arith.constant dense<0.000000e+00> : vector<256xf32>
      %98 = vector.multi_reduction <add>, %97, %cst_46 [1] : vector<256x9xf32> to vector<256xf32>
      %99 = vector.shape_cast %98 : vector<256xf32> to vector<256x1xf32>
      %100 = math.log %99 : vector<256x1xf32>
      %101 = vector.broadcast %100 : vector<256x1xf32> to vector<256x9xf32>
      %102 = arith.subf %96, %101 : vector<256x9xf32>
      %c0_47 = arith.constant 0 : index
      %c0_48 = arith.constant 0 : index
      %103 = vector.load %arg8[%c0_47, %c0_48] : memref<256x9xf32, #tpu.memory_space<vmem>>, vector<256x9xf32>
      tpu.vector_store %arg8[%c0_47, %c0_48], %102 {strides = array<i32>} : memref<256x9xf32, #tpu.memory_space<vmem>>, vector<256x9xf32>,
    } else {
    }
    return
  }
  func.func @transform_0(%arg0: i32) -> (i32, i32) {
    %c0_i32 = arith.constant 0 : i32
    %c0_i32_0 = arith.constant 0 : i32
    %c0_i32_1 = arith.constant 0 : i32
    return %c0_i32, %c0_i32_0 : i32, i32
  }
  func.func @transform_1(%arg0: i32) -> (i32, i32) {
    %c0_i32 = arith.constant 0 : i32
    %c0_i32_0 = arith.constant 0 : i32
    %c0_i32_1 = arith.constant 0 : i32
    return %c0_i32, %c0_i32_0 : i32, i32
  }
  func.func @transform_2(%arg0: i32) -> (i32, i32) {
    %c0_i32 = arith.constant 0 : i32
    %c0_i32_0 = arith.constant 0 : i32
    %c0_i32_1 = arith.constant 0 : i32
    return %c0_i32, %c0_i32_0 : i32, i32
  }
  func.func @transform_3(%arg0: i32) -> (i32, i32, i32) {
    %c0_i32 = arith.constant 0 : i32
    %c0_i32_0 = arith.constant 0 : i32
    %c0_i32_1 = arith.constant 0 : i32
    return %arg0, %c0_i32, %c0_i32_0 : i32, i32, i32
  }
  func.func @transform_4(%arg0: i32) -> (i32, i32, i32) {
    %c0_i32 = arith.constant 0 : i32
    %c0_i32_0 = arith.constant 0 : i32
    %c0_i32_1 = arith.constant 0 : i32
    return %arg0, %c0_i32, %c0_i32_0 : i32, i32, i32
  }
  func.func @transform_5(%arg0: i32) -> (i32, i32) {
    %c0_i32 = arith.constant 0 : i32
    %c0_i32_0 = arith.constant 0 : i32
    %c0_i32_1 = arith.constant 0 : i32
    return %c0_i32, %c0_i32_0 : i32, i32
  }
  func.func @transform_6(%arg0: i32) -> (i32, i32) {
    %c0_i32 = arith.constant 0 : i32
    %c0_i32_0 = arith.constant 0 : i32
    %c0_i32_1 = arith.constant 0 : i32
    return %c0_i32, %c0_i32_0 : i32, i32
  }
  func.func @transform_7(%arg0: i32) -> (i32, i32) {
    %c0_i32 = arith.constant 0 : i32
    %c0_i32_0 = arith.constant 0 : i32
    %c0_i32_1 = arith.constant 0 : i32
    return %c0_i32, %c0_i32_0 : i32, i32
  }
}

</mosaic_0001>

<llo_original>
// kernel: anglenet_pallas.1
$region0: #{anglenet_pallas.1}
  #allocation0 [shape = 'u32[]', space=smem, size = 0x4, offset = 0x4, fixed_abs, tag = 'smem constant byte address 0x4 - core index']
  #allocation1 [shape = 'u32[72,128]{1,0:T(1,128)}', space=vmem, size = 0x9000, scoped, tag = 'internal scratch']
  #allocation2 [shape = 'f32[2,128,128]{2,1,0:T(8,128)}', space=vmem, size = 0x20000, scoped, tag = 'scratch operand']
  %s0 = inlined_call_operand.vmem [shape: f32[256,5], index: 0, kind: input, shape index: {}]
  %s1 = inlined_call_operand.vmem [shape: f32[5,128], index: 1, kind: input, shape index: {}]
  %s2 = inlined_call_operand.vmem [shape: f32[1,128], index: 2, kind: input, shape index: {}]
  %s3 = inlined_call_operand.vmem [shape: f32[3,128,128], index: 3, kind: input, shape index: {}]
  %s4 = inlined_call_operand.vmem [shape: f32[3,128,128], index: 4, kind: input, shape index: {}]
  %s5 = inlined_call_operand.vmem [shape: f32[128,9], index: 5, kind: input, shape index: {}]
  %s6 = inlined_call_operand.vmem [shape: f32[1,9], index: 6, kind: input, shape index: {}]
  %s7 = inlined_call_operand.vmem [shape: f32[256,9], index: 7, kind: output, shape index: {}]
  %s8 = sld [smem:[#allocation0]]
  $region69: #{anglenet_pallas.1} parent=0
    _
  %s10 = ssub.s32 1, %s8
  %s11 = scalar_select 0, %s10, %s8
  loop: start=0, step=1, limit=5
  $region2: #{anglenet_pallas.1} parent=0 // loop_pre_header
    _
  $region3: #{anglenet_pallas.1} parent=0 // loop_header
    %s13 = sphi 0, %s17
    %p14 = scmp.ge.s32.totalorder %s13, 5
    %s21 = sphi 0, %s21
    %s23 = sphi 0, %s21
    %s24 = sphi 0, %s23
    %s38 = sphi 0, %s24
    %s42 = sphi 0, %s42
    %s44 = sphi 0, %s42
    %s45 = sphi 0, %s44
    %s59 = sphi 0, %s45
    %s63 = sphi 0, %s63
    %s65 = sphi 0, %s63
    %s66 = sphi 0, %s65
    %s80 = sphi 0, %s66
    %s86 = sphi 0, %s88
    %s89 = sphi 0, %s86
    %s90 = sphi 0, %s89
    %s106 = sphi 0, %s90
    %s112 = sphi 0, %s114
    %s115 = sphi 0, %s112
    %s116 = sphi 0, %s115
    %s132 = sphi 0, %s116
    %s136 = sphi 0, %s136
    %s138 = sphi 0, %s136
    %s139 = sphi 0, %s138
    %s153 = sphi 0, %s139
    %s157 = sphi 0, %s157
    %s159 = sphi 0, %s157
    %s160 = sphi 0, %s159
    %s174 = sphi 0, %s160
    %s178 = sphi 0, %s178
    %s180 = sphi 0, %s178
    %s181 = sphi 0, %s180
    %s195 = sphi 0, %s181
  $region4: #{anglenet_pallas.1} parent=0 // loop_header_branch
    %16 = sbr.rel (%p14) target = $region8
  $region5: #{anglenet_pallas.1} parent=0 // loop_body
    %s18 = ssub.s32 %s13, 1
    %s19 = ssub.s32 %s13, 2
    %s20 = sadd.s32 %s13, 1
    %s22 = sadd.s32 %s21, 1
    %p25 = scmp.eq.s32.totalorder %s13, 2
    %p26 = scmp.ne.s32.totalorder %s21, %s23
    %p27 = scmp.eq.s32.totalorder %s13, 0
    %p28 = por %p26, %p27
    %p29 = scmp.ne.s32.totalorder %s21, %s23
    %p30 = scmp.eq.s32.totalorder %s18, 2
    %p31 = por %p29, %p30
    %p32 = scmp.ne.s32.totalorder %s23, %s24
    %p33 = scmp.eq.s32.totalorder %s18, 0
    %p34 = por %p32, %p33
    %p35 = scmp.ne.s32.totalorder %s23, %s24
    %p36 = scmp.eq.s32.totalorder %s19, 2
    %p37 = por %p35, %p36
    %p39 = scmp.ne.s32.totalorder %s24, %s38
    %p40 = scmp.eq.s32.totalorder %s19, 0
    %p41 = por %p39, %p40
    %s43 = sadd.s32 %s42, 1
    %p46 = scmp.eq.s32.totalorder %s13, 2
    %p47 = scmp.ne.s32.totalorder %s42, %s44
    %p48 = scmp.eq.s32.totalorder %s13, 0
    %p49 = por %p47, %p48
    %p50 = scmp.ne.s32.totalorder %s42, %s44
    %p51 = scmp.eq.s32.totalorder %s18, 2
    %p52 = por %p50, %p51
    %p53 = scmp.ne.s32.totalorder %s44, %s45
    %p54 = scmp.eq.s32.totalorder %s18, 0
    %p55 = por %p53, %p54
    %p56 = scmp.ne.s32.totalorder %s44, %s45
    %p57 = scmp.eq.s32.totalorder %s19, 2
    %p58 = por %p56, %p57
    %p60 = scmp.ne.s32.totalorder %s45, %s59
    %p61 = scmp.eq.s32.totalorder %s19, 0
    %p62 = por %p60, %p61
    %s64 = sadd.s32 %s63, 1
    %p67 = scmp.eq.s32.totalorder %s13, 2
    %p68 = scmp.ne.s32.totalorder %s63, %s65
    %p69 = scmp.eq.s32.totalorder %s13, 0
    %p70 = por %p68, %p69
    %p71 = scmp.ne.s32.totalorder %s63, %s65
    %p72 = scmp.eq.s32.totalorder %s18, 2
    %p73 = por %p71, %p72
    %p74 = scmp.ne.s32.totalorder %s65, %s66
    %p75 = scmp.eq.s32.totalorder %s18, 0
    %p76 = por %p74, %p75
    %p77 = scmp.ne.s32.totalorder %s65, %s66
    %p78 = scmp.eq.s32.totalorder %s19, 2
    %p79 = por %p77, %p78
    %p81 = scmp.ne.s32.totalorder %s66, %s80
    %p82 = scmp.eq.s32.totalorder %s19, 0
    %p83 = por %p81, %p82
    %s84 = ssub.s32 %s13, %s20
    %p85 = scmp.eq.s32.totalorder %s84, 0
    %s87 = sadd.s32 %s86, 1
    %s88 = scalar_select %p85, %s86, %s87
    %p91 = pneg %p85
    %p92 = scmp.eq.s32.totalorder %s13, 2
    %p93 = por %p91, %p92
    %p94 = scmp.ne.s32.totalorder %s86, %s89
    %p95 = scmp.eq.s32.totalorder %s13, 0
    %p96 = por %p94, %p95
    %p97 = scmp.ne.s32.totalorder %s86, %s89
    %p98 = scmp.eq.s32.totalorder %s18, 2
    %p99 = por %p97, %p98
    %p100 = scmp.ne.s32.totalorder %s89, %s90
    %p101 = scmp.eq.s32.totalorder %s18, 0
    %p102 = por %p100, %p101
    %p103 = scmp.ne.s32.totalorder %s89, %s90
    %p104 = scmp.eq.s32.totalorder %s19, 2
    %p105 = por %p103, %p104
    %p107 = scmp.ne.s32.totalorder %s90, %s106
    %p108 = scmp.eq.s32.totalorder %s19, 0
    %p109 = por %p107, %p108
    %s110 = ssub.s32 %s13, %s20
    %p111 = scmp.eq.s32.totalorder %s110, 0
    %s113 = sadd.s32 %s112, 1
    %s114 = scalar_select %p111, %s112, %s113
    %p117 = pneg %p111
    %p118 = scmp.eq.s32.totalorder %s13, 2
    %p119 = por %p117, %p118
    %p120 = scmp.ne.s32.totalorder %s112, %s115
    %p121 = scmp.eq.s32.totalorder %s13, 0
    %p122 = por %p120, %p121
    %p123 = scmp.ne.s32.totalorder %s112, %s115
    %p124 = scmp.eq.s32.totalorder %s18, 2
    %p125 = por %p123, %p124
    %p126 = scmp.ne.s32.totalorder %s115, %s116
    %p127 = scmp.eq.s32.totalorder %s18, 0
    %p128 = por %p126, %p127
    %p129 = scmp.ne.s32.totalorder %s115, %s116
    %p130 = scmp.eq.s32.totalorder %s19, 2
    %p131 = por %p129, %p130
    %p133 = scmp.ne.s32.totalorder %s116, %s132
    %p134 = scmp.eq.s32.totalorder %s19, 0
    %p135 = por %p133, %p134
    %s137 = sadd.s32 %s136, 1
    %p140 = scmp.eq.s32.totalorder %s13, 2
    %p141 = scmp.ne.s32.totalorder %s136, %s138
    %p142 = scmp.eq.s32.totalorder %s13, 0
    %p143 = por %p141, %p142
    %p144 = scmp.ne.s32.totalorder %s136, %s138
    %p145 = scmp.eq.s32.totalorder %s18, 2
    %p146 = por %p144, %p145
    %p147 = scmp.ne.s32.totalorder %s138, %s139
    %p148 = scmp.eq.s32.totalorder %s18, 0
    %p149 = por %p147, %p148
    %p150 = scmp.ne.s32.totalorder %s138, %s139
    %p151 = scmp.eq.s32.totalorder %s19, 2
    %p152 = por %p150, %p151
    %p154 = scmp.ne.s32.totalorder %s139, %s153
    %p155 = scmp.eq.s32.totalorder %s19, 0
    %p156 = por %p154, %p155
    %s158 = sadd.s32 %s157, 1
    %p161 = scmp.eq.s32.totalorder %s13, 2
    %p162 = scmp.ne.s32.totalorder %s157, %s159
    %p163 = scmp.eq.s32.totalorder %s13, 0
    %p164 = por %p162, %p163
    %p165 = scmp.ne.s32.totalorder %s157, %s159
    %p166 = scmp.eq.s32.totalorder %s18, 2
    %p167 = por %p165, %p166
    %p168 = scmp.ne.s32.totalorder %s159, %s160
    %p169 = scmp.eq.s32.totalorder %s18, 0
    %p170 = por %p168, %p169
    %p171 = scmp.ne.s32.totalorder %s159, %s160
    %p172 = scmp.eq.s32.totalorder %s19, 2
    %p173 = por %p171, %p172
    %p175 = scmp.ne.s32.totalorder %s160, %s174
    %p176 = scmp.eq.s32.totalorder %s19, 0
    %p177 = por %p175, %p176
    %s179 = sadd.s32 %s178, 1
    %p182 = scmp.eq.s32.totalorder %s13, 2
    %p183 = scmp.ne.s32.totalorder %s178, %s180
    %p184 = scmp.eq.s32.totalorder %s13, 0
    %p185 = por %p183, %p184
    %p186 = scmp.ne.s32.totalorder %s178, %s180
    %p187 = scmp.eq.s32.totalorder %s18, 2
    %p188 = por %p186, %p187
    %p189 = scmp.ne.s32.totalorder %s180, %s181
    %p190 = scmp.eq.s32.totalorder %s18, 0
    %p191 = por %p189, %p190
    %p192 = scmp.ne.s32.totalorder %s180, %s181
    %p193 = scmp.eq.s32.totalorder %s19, 2
    %p194 = por %p192, %p193
    %p196 = scmp.ne.s32.totalorder %s181, %s195
    %p197 = scmp.eq.s32.totalorder %s19, 0
    %p198 = por %p196, %p197
    %p199 = scmp.le.s32.totalorder 1, %s13
    %p200 = scmp.lt.s32.totalorder %s13, 4
    %p201 = pnand %p199, %p200
    %p202 = pneg %p201
    // Predicated region
    $region9: #{anglenet_pallas.1} parent=5 // pred_check
      _
    $region10: #{anglenet_pallas.1} parent=5 // pred_check_branch
      %204 = sbr.rel (%p201) target = $region12
    $region11: #{anglenet_pallas.1} parent=5 // pred_region
      %s205 = ssub.s32 %s13, 1
      // Predicated region
      $region13: #{anglenet_pallas.1} parent=11 // pred_check
        %p206 = pneg %p34
      $region14: #{anglenet_pallas.1} parent=11 // pred_check_branch
        %208 = sbr.rel (%p206) target = $region16
      $region15: #{anglenet_pallas.1} parent=11 // pred_region
        _
      $region16: #{anglenet_pallas.1} parent=11 // pred_fallthru
        _
      // Predicated region
      $region17: #{anglenet_pallas.1} parent=11 // pred_check
        %p209 = pneg %p55
      $region18: #{anglenet_pallas.1} parent=11 // pred_check_branch
        %211 = sbr.rel (%p209) target = $region20
      $region19: #{anglenet_pallas.1} parent=11 // pred_region
        _
      $region20: #{anglenet_pallas.1} parent=11 // pred_fallthru
        _
      // Predicated region
      $region21: #{anglenet_pallas.1} parent=11 // pred_check
        %p212 = pneg %p76
      $region22: #{anglenet_pallas.1} parent=11 // pred_check_branch
        %214 = sbr.rel (%p212) target = $region24
      $region23: #{anglenet_pallas.1} parent=11 // pred_region
        _
      $region24: #{anglenet_pallas.1} parent=11 // pred_fallthru
        _
      // Predicated region
      $region25: #{anglenet_pallas.1} parent=11 // pred_check
        %p215 = pneg %p149
      $region26: #{anglenet_pallas.1} parent=11 // pred_check_branch
        %217 = sbr.rel (%p215) target = $region28
      $region27: #{anglenet_pallas.1} parent=11 // pred_region
        _
      $region28: #{anglenet_pallas.1} parent=11 // pred_fallthru
        _
      // Predicated region
      $region29: #{anglenet_pallas.1} parent=11 // pred_check
        %p218 = pneg %p170
      $region30: #{anglenet_pallas.1} parent=11 // pred_check_branch
        %220 = sbr.rel (%p218) target = $region32
      $region31: #{anglenet_pallas.1} parent=11 // pred_region
        _
      $region32: #{anglenet_pallas.1} parent=11 // pred_fallthru
        _
    $region12: #{anglenet_pallas.1} parent=5 // pred_fallthru
      _
    %p221 = scmp.lt.s32.totalorder %s13, 3
    // Predicated region
    $region33: #{anglenet_pallas.1} parent=5 // pred_check
      %p222 = pneg %p221
    $region34: #{anglenet_pallas.1} parent=5 // pred_check_branch
      %224 = sbr.rel (%p222) target = $region36
    $region35: #{anglenet_pallas.1} parent=5 // pred_region
      // Predicated region
      $region37: #{anglenet_pallas.1} parent=35 // pred_check
        %p225 = pneg %p96
      $region38: #{anglenet_pallas.1} parent=35 // pred_check_branch
        %227 = sbr.rel (%p225) target = $region40
      $region39: #{anglenet_pallas.1} parent=35 // pred_region
        %p228 = scmp.lt.s32.totalorder %s13, 2
        %s229 = scalar_select %p228, %s13, 2
        %s230 = smul.addr %s229, 16
        %s231 = smul.addr %s230, 8
        %s232 = scalar_lea.vmem %s3, %s231
      $region40: #{anglenet_pallas.1} parent=35 // pred_fallthru
        _
      // Predicated region
      $region41: #{anglenet_pallas.1} parent=35 // pred_check
        %p233 = pneg %p122
      $region42: #{anglenet_pallas.1} parent=35 // pred_check_branch
        %235 = sbr.rel (%p233) target = $region44
      $region43: #{anglenet_pallas.1} parent=35 // pred_region
        %p236 = scmp.lt.s32.totalorder %s13, 2
        %s237 = scalar_select %p236, %s13, 2
        %s238 = smul.addr %s237, 16
        %s239 = smul.addr %s238, 8
        %s240 = scalar_lea.vmem %s4, %s239
      $region44: #{anglenet_pallas.1} parent=35 // pred_fallthru
        _
    $region36: #{anglenet_pallas.1} parent=5 // pred_fallthru
      _
    %p241 = scmp.le.s32.totalorder 1, %s13
    %p242 = scmp.lt.s32.totalorder %s13, 4
    %p243 = pnand %p241, %p242
    %p244 = pneg %p243
    // Predicated region
    $region45: #{anglenet_pallas.1} parent=5 // pred_check
      _
    $region46: #{anglenet_pallas.1} parent=5 // pred_check_branch
      %246 = sbr.rel (%p243) target = $region48
    $region47: #{anglenet_pallas.1} parent=5 // pred_region
      %s247 = ssub.s32 %s13, 1
      %p248 = pneg %p34
      %p249 = pneg %p31
      %p250 = pneg %p55
      %p251 = pneg %p52
      %p252 = pneg %p76
      %p253 = pneg %p73
      %p254 = scmp.lt.s32.totalorder %s18, 2
      %s255 = scalar_select %p254, %s18, 2
      %s256 = smul.addr %s255, 16
      %s257 = smul.addr %s256, 8
      %s258 = scalar_lea.vmem %s3, %s257
      %p259 = pneg %p102
      %p260 = pneg %p99
      %p261 = scmp.lt.s32.totalorder %s18, 2
      %s262 = scalar_select %p261, %s18, 2
      %s263 = smul.addr %s262, 16
      %s264 = smul.addr %s263, 8
      %s265 = scalar_lea.vmem %s4, %s264
      %p266 = pneg %p128
      %p267 = pneg %p125
      %p268 = pneg %p149
      %p269 = pneg %p146
      %p270 = pneg %p170
      %p271 = pneg %p167
      %p272 = pneg %p191
      %p273 = pneg %p188
      %p274 = scmp.lt.s32.totalorder %s18, 2
      %s275 = scalar_select %p274, %s18, 2
      %s276 = smul.addr %s275, 16
      %s277 = smul.addr %s276, 8
      %s278 = scalar_lea.vmem %s3, %s277
      %p279 = scmp.lt.s32.totalorder %s18, 2
      %s280 = scalar_select %p279, %s18, 2
      %s281 = smul.addr %s280, 16
      %s282 = smul.addr %s281, 8
      %s283 = scalar_lea.vmem %s4, %s282
      %p284 = scmp.eq.s32.totalorder %s18, 0
      // Predicated region
      $region49: #{anglenet_pallas.1} parent=47 // pred_check
        %p285 = pneg %p284
      $region50: #{anglenet_pallas.1} parent=47 // pred_check_branch
        %287 = sbr.rel (%p285) target = $region52
      $region51: #{anglenet_pallas.1} parent=47 // pred_region
        %v288 = vld [vmem:[%s0] sm:$0xff]
        %v289 = vld [vmem:[%s0 + $0x8] sm:$0xff]
        %v290 = vld [vmem:[%s0 + $0x10] sm:$0xff]
        %v291 = vld [vmem:[%s0 + $0x18] sm:$0xff]
        %v292 = vld [vmem:[%s0 + $0x20] sm:$0xff]
        %v293 = vld [vmem:[%s0 + $0x28] sm:$0xff]
        %v294 = vld [vmem:[%s0 + $0x30] sm:$0xff]
        %v295 = vld [vmem:[%s0 + $0x38] sm:$0xff]
        %v296 = vld [vmem:[%s0 + $0x40] sm:$0xff]
        %v297 = vld [vmem:[%s0 + $0x48] sm:$0xff]
        %v298 = vld [vmem:[%s0 + $0x50] sm:$0xff]
        %v299 = vld [vmem:[%s0 + $0x58] sm:$0xff]
        %v300 = vld [vmem:[%s0 + $0x60] sm:$0xff]
        %v301 = vld [vmem:[%s0 + $0x68] sm:$0xff]
        %v302 = vld [vmem:[%s0 + $0x70] sm:$0xff]
        %v303 = vld [vmem:[%s0 + $0x78] sm:$0xff]
        %v304 = vld [vmem:[%s0 + $0x80] sm:$0xff]
        %v305 = vld [vmem:[%s0 + $0x88] sm:$0xff]
        %v306 = vld [vmem:[%s0 + $0x90] sm:$0xff]
        %v307 = vld [vmem:[%s0 + $0x98] sm:$0xff]
        %v308 = vld [vmem:[%s0 + $0xa0] sm:$0xff]
        %v309 = vld [vmem:[%s0 + $0xa8] sm:$0xff]
        %v310 = vld [vmem:[%s0 + $0xb0] sm:$0xff]
        %v311 = vld [vmem:[%s0 + $0xb8] sm:$0xff]
        %v312 = vld [vmem:[%s0 + $0xc0] sm:$0xff]
        %v313 = vld [vmem:[%s0 + $0xc8] sm:$0xff]
        %v314 = vld [vmem:[%s0 + $0xd0] sm:$0xff]
        %v315 = vld [vmem:[%s0 + $0xd8] sm:$0xff]
        %v316 = vld [vmem:[%s0 + $0xe0] sm:$0xff]
        %v317 = vld [vmem:[%s0 + $0xe8] sm:$0xff]
        %v318 = vld [vmem:[%s0 + $0xf0] sm:$0xff]
        %v319 = vld [vmem:[%s0 + $0xf8] sm:$0xff]
        %v320 = vld [vmem:[%s1] sm:$0x1f]
        %v321 = vld [vmem:[%s2] sm:$0x1]
        %v323 = vperm.slane %v321, 0
        %vm325 = vcmask 39936
        %v327 = vsel %vm325, %v288, 0
        %v330 = vsel %vm325, %v289, 0
        %v333 = vsel %vm325, %v290, 0
        %v336 = vsel %vm325, %v291, 0
        %v339 = vsel %vm325, %v292, 0
        %v342 = vsel %vm325, %v293, 0
        %v345 = vsel %vm325, %v294, 0
        %v348 = vsel %vm325, %v295, 0
        %v351 = vsel %vm325, %v296, 0
        %v354 = vsel %vm325, %v297, 0
        %v357 = vsel %vm325, %v298, 0
        %v360 = vsel %vm325, %v299, 0
        %v363 = vsel %vm325, %v300, 0
        %v366 = vsel %vm325, %v301, 0
        %v369 = vsel %vm325, %v302, 0
        %v372 = vsel %vm325, %v303, 0
        %v375 = vsel %vm325, %v304, 0
        %v378 = vsel %vm325, %v305, 0
        %v381 = vsel %vm325, %v306, 0
        %v384 = vsel %vm325, %v307, 0
        %v387 = vsel %vm325, %v308, 0
        %v390 = vsel %vm325, %v309, 0
        %v393 = vsel %vm325, %v310, 0
        %v396 = vsel %vm325, %v311, 0
        %v399 = vsel %vm325, %v312, 0
        %v402 = vsel %vm325, %v313, 0
        %v405 = vsel %vm325, %v314, 0
        %v408 = vsel %vm325, %v315, 0
        %v411 = vsel %vm325, %v316, 0
        %v414 = vsel %vm325, %v317, 0
        %v417 = vsel %vm325, %v318, 0
        %v420 = vsel %vm325, %v319, 0
        %vm422 = vcmask 1044480
        %v424 = vsel %vm422, %v320, 0
        %426 = vmatpush.msra.mxu0 0.0
        %427 = vmatpush.msra.mxu0 0.0
        %428 = vmatpush.msra.mxu0 0.0
        %429 = vmatpush.msra.mxu0 0.0
        %430 = vmatpush.msra.mxu0 0.0
        %431 = vmatpush.msra.mxu0 0.0
        %432 = vmatpush.msra.mxu0 0.0
        %433 = vmatpush.msra.mxu0 0.0
        %434 = vmatpush.msra.mxu0 0.0
        %435 = vmatpush.msra.mxu0 0.0
        %436 = vmatpush.msra.mxu0 0.0
        %437 = vmatpush.msra.mxu0 0.0
        %438 = vmatpush.msra.mxu0 0.0
        %439 = vmatpush.msra.mxu0 0.0
        %440 = vmatpush.msra.mxu0 0.0
        %441 = vmatpush.msra.mxu0 %v424
        %442 = vmatmul.f32.gmra.mxu0 %v327
        %v443 = vpop.f32.mrf.mxu0
        %v444 = vadd.f32 %v323, %v443
        %445 = vmatmul.f32.gmra.mxu0 %v330
        %v446 = vpop.f32.mrf.mxu0
        %v447 = vadd.f32 %v323, %v446
        %448 = vmatmul.f32.gmra.mxu0 %v333
        %v449 = vpop.f32.mrf.mxu0
        %v450 = vadd.f32 %v323, %v449
        %451 = vmatmul.f32.gmra.mxu0 %v336
        %v452 = vpop.f32.mrf.mxu0
        %v453 = vadd.f32 %v323, %v452
        %454 = vmatmul.f32.gmra.mxu0 %v339
        %v455 = vpop.f32.mrf.mxu0
        %v456 = vadd.f32 %v323, %v455
        %457 = vmatmul.f32.gmra.mxu0 %v342
        %v458 = vpop.f32.mrf.mxu0
        %v459 = vadd.f32 %v323, %v458
        %460 = vmatmul.f32.gmra.mxu0 %v345
        %v461 = vpop.f32.mrf.mxu0
        %v462 = vadd.f32 %v323, %v461
        %463 = vmatmul.f32.gmra.mxu0 %v348
        %v464 = vpop.f32.mrf.mxu0
        %v465 = vadd.f32 %v323, %v464
        %466 = vmatmul.f32.gmra.mxu0 %v351
        %v467 = vpop.f32.mrf.mxu0
        %v468 = vadd.f32 %v323, %v467
        %469 = vmatmul.f32.gmra.mxu0 %v354
        %v470 = vpop.f32.mrf.mxu0
        %v471 = vadd.f32 %v323, %v470
        %472 = vmatmul.f32.gmra.mxu0 %v357
        %v473 = vpop.f32.mrf.mxu0
        %v474 = vadd.f32 %v323, %v473
        %475 = vmatmul.f32.gmra.mxu0 %v360
        %v476 = vpop.f32.mrf.mxu0
        %v477 = vadd.f32 %v323, %v476
        %478 = vmatmul.f32.gmra.mxu0 %v363
        %v479 = vpop.f32.mrf.mxu0
        %v480 = vadd.f32 %v323, %v479
        %481 = vmatmul.f32.gmra.mxu0 %v366
        %v482 = vpop.f32.mrf.mxu0
        %v483 = vadd.f32 %v323, %v482
        %484 = vmatmul.f32.gmra.mxu0 %v369
        %v485 = vpop.f32.mrf.mxu0
        %v486 = vadd.f32 %v323, %v485
        %487 = vmatmul.f32.gmra.mxu0 %v372
        %v488 = vpop.f32.mrf.mxu0
        %v489 = vadd.f32 %v323, %v488
        %490 = vmatmul.f32.gmra.mxu0 %v375
        %v491 = vpop.f32.mrf.mxu0
        %v492 = vadd.f32 %v323, %v491
        %493 = vmatmul.f32.gmra.mxu0 %v378
        %v494 = vpop.f32.mrf.mxu0
        %v495 = vadd.f32 %v323, %v494
        %496 = vmatmul.f32.gmra.mxu0 %v381
        %v497 = vpop.f32.mrf.mxu0
        %v498 = vadd.f32 %v323, %v497
        %499 = vmatmul.f32.gmra.mxu0 %v384
        %v500 = vpop.f32.mrf.mxu0
        %v501 = vadd.f32 %v323, %v500
        %502 = vmatmul.f32.gmra.mxu0 %v387
        %v503 = vpop.f32.mrf.mxu0
        %v504 = vadd.f32 %v323, %v503
        %505 = vmatmul.f32.gmra.mxu0 %v390
        %v506 = vpop.f32.mrf.mxu0
        %v507 = vadd.f32 %v323, %v506
        %508 = vmatmul.f32.gmra.mxu0 %v393
        %v509 = vpop.f32.mrf.mxu0
        %v510 = vadd.f32 %v323, %v509
        %511 = vmatmul.f32.gmra.mxu0 %v396
        %v512 = vpop.f32.mrf.mxu0
        %v513 = vadd.f32 %v323, %v512
        %514 = vmatmul.f32.gmra.mxu0 %v399
        %v515 = vpop.f32.mrf.mxu0
        %v516 = vadd.f32 %v323, %v515
        %517 = vmatmul.f32.gmra.mxu0 %v402
        %v518 = vpop.f32.mrf.mxu0
        %v519 = vadd.f32 %v323, %v518
        %520 = vmatmul.f32.gmra.mxu0 %v405
        %v521 = vpop.f32.mrf.mxu0
        %v522 = vadd.f32 %v323, %v521
        %523 = vmatmul.f32.gmra.mxu0 %v408
        %v524 = vpop.f32.mrf.mxu0
        %v525 = vadd.f32 %v323, %v524
        %526 = vmatmul.f32.gmra.mxu0 %v411
        %v527 = vpop.f32.mrf.mxu0
        %v528 = vadd.f32 %v323, %v527
        %529 = vmatmul.f32.gmra.mxu0 %v414
        %v530 = vpop.f32.mrf.mxu0
        %v531 = vadd.f32 %v323, %v530
        %532 = vmatmul.f32.gmra.mxu0 %v417
        %v533 = vpop.f32.mrf.mxu0
        %v534 = vadd.f32 %v323, %v533
        %535 = vmatmul.f32.gmra.mxu0 %v420
        %v536 = vpop.f32.mrf.mxu0
        %v537 = vadd.f32 %v323, %v536
        %538 = vdwg.mxu0
        %539 = vst [vmem:[#allocation2] sm:$0xff] %v444
        %540 = vst [vmem:[#allocation2 + $0x8] sm:$0xff] %v447
        %541 = vst [vmem:[#allocation2 + $0x10] sm:$0xff] %v450
        %542 = vst [vmem:[#allocation2 + $0x18] sm:$0xff] %v453
        %543 = vst [vmem:[#allocation2 + $0x20] sm:$0xff] %v456
        %544 = vst [vmem:[#allocation2 + $0x28] sm:$0xff] %v459
        %545 = vst [vmem:[#allocation2 + $0x30] sm:$0xff] %v462
        %546 = vst [vmem:[#allocation2 + $0x38] sm:$0xff] %v465
        %547 = vst [vmem:[#allocation2 + $0x40] sm:$0xff] %v468
        %548 = vst [vmem:[#allocation2 + $0x48] sm:$0xff] %v471
        %549 = vst [vmem:[#allocation2 + $0x50] sm:$0xff] %v474
        %550 = vst [vmem:[#allocation2 + $0x58] sm:$0xff] %v477
        %551 = vst [vmem:[#allocation2 + $0x60] sm:$0xff] %v480
        %552 = vst [vmem:[#allocation2 + $0x68] sm:$0xff] %v483
        %553 = vst [vmem:[#allocation2 + $0x70] sm:$0xff] %v486
        %554 = vst [vmem:[#allocation2 + $0x78] sm:$0xff] %v489
        %555 = vst [vmem:[#allocation2 + $0x80] sm:$0xff] %v492
        %556 = vst [vmem:[#allocation2 + $0x88] sm:$0xff] %v495
        %557 = vst [vmem:[#allocation2 + $0x90] sm:$0xff] %v498
        %558 = vst [vmem:[#allocation2 + $0x98] sm:$0xff] %v501
        %559 = vst [vmem:[#allocation2 + $0xa0] sm:$0xff] %v504
        %560 = vst [vmem:[#allocation2 + $0xa8] sm:$0xff] %v507
        %561 = vst [vmem:[#allocation2 + $0xb0] sm:$0xff] %v510
        %562 = vst [vmem:[#allocation2 + $0xb8] sm:$0xff] %v513
        %563 = vst [vmem:[#allocation2 + $0xc0] sm:$0xff] %v516
        %564 = vst [vmem:[#allocation2 + $0xc8] sm:$0xff] %v519
        %565 = vst [vmem:[#allocation2 + $0xd0] sm:$0xff] %v522
        %566 = vst [vmem:[#allocation2 + $0xd8] sm:$0xff] %v525
        %567 = vst [vmem:[#allocation2 + $0xe0] sm:$0xff] %v528
        %568 = vst [vmem:[#allocation2 + $0xe8] sm:$0xff] %v531
        %569 = vst [vmem:[#allocation2 + $0xf0] sm:$0xff] %v534
        %570 = vst [vmem:[#allocation2 + $0xf8] sm:$0xff] %v537
      $region52: #{anglenet_pallas.1} parent=47 // pred_fallthru
        _
      %v571 = vld [vmem:[#allocation2] sm:$0xff]
      %v572 = vld [vmem:[#allocation2 + $0x8] sm:$0xff]
      %v573 = vld [vmem:[#allocation2 + $0x10] sm:$0xff]
      %v574 = vld [vmem:[#allocation2 + $0x18] sm:$0xff]
      %v575 = vld [vmem:[#allocation2 + $0x20] sm:$0xff]
      %v576 = vld [vmem:[#allocation2 + $0x28] sm:$0xff]
      %v577 = vld [vmem:[#allocation2 + $0x30] sm:$0xff]
      %v578 = vld [vmem:[#allocation2 + $0x38] sm:$0xff]
      %v579 = vld [vmem:[#allocation2 + $0x40] sm:$0xff]
      %v580 = vld [vmem:[#allocation2 + $0x48] sm:$0xff]
      %v581 = vld [vmem:[#allocation2 + $0x50] sm:$0xff]
      %v582 = vld [vmem:[#allocation2 + $0x58] sm:$0xff]
      %v583 = vld [vmem:[#allocation2 + $0x60] sm:$0xff]
      %v584 = vld [vmem:[#allocation2 + $0x68] sm:$0xff]
      %v585 = vld [vmem:[#allocation2 + $0x70] sm:$0xff]
      %v586 = vld [vmem:[#allocation2 + $0x78] sm:$0xff]
      %v587 = vld [vmem:[#allocation2 + $0x80] sm:$0xff]
      %v588 = vld [vmem:[#allocation2 + $0x88] sm:$0xff]
      %v589 = vld [vmem:[#allocation2 + $0x90] sm:$0xff]
      %v590 = vld [vmem:[#allocation2 + $0x98] sm:$0xff]
      %v591 = vld [vmem:[#allocation2 + $0xa0] sm:$0xff]
      %v592 = vld [vmem:[#allocation2 + $0xa8] sm:$0xff]
      %v593 = vld [vmem:[#allocation2 + $0xb0] sm:$0xff]
      %v594 = vld [vmem:[#allocation2 + $0xb8] sm:$0xff]
      %v595 = vld [vmem:[#allocation2 + $0xc0] sm:$0xff]
      %v596 = vld [vmem:[#allocation2 + $0xc8] sm:$0xff]
      %v597 = vld [vmem:[#allocation2 + $0xd0] sm:$0xff]
      %v598 = vld [vmem:[#allocation2 + $0xd8] sm:$0xff]
      %v599 = vld [vmem:[#allocation2 + $0xe0] sm:$0xff]
      %v600 = vld [vmem:[#allocation2 + $0xe8] sm:$0xff]
      %v601 = vld [vmem:[#allocation2 + $0xf0] sm:$0xff]
      %v602 = vld [vmem:[#allocation2 + $0xf8] sm:$0xff]
      %v603 = vld [vmem:[%s278] sm:$0xff]
      %v604 = vld [vmem:[%s278 + $0x8] sm:$0xff]
      %v605 = vld [vmem:[%s278 + $0x10] sm:$0xff]
      %v606 = vld [vmem:[%s278 + $0x18] sm:$0xff]
      %v607 = vld [vmem:[%s278 + $0x20] sm:$0xff]
      %v608 = vld [vmem:[%s278 + $0x28] sm:$0xff]
      %v609 = vld [vmem:[%s278 + $0x30] sm:$0xff]
      %v610 = vld [vmem:[%s278 + $0x38] sm:$0xff]
      %v611 = vld [vmem:[%s278 + $0x40] sm:$0xff]
      %v612 = vld [vmem:[%s278 + $0x48] sm:$0xff]
      %v613 = vld [vmem:[%s278 + $0x50] sm:$0xff]
      %v614 = vld [vmem:[%s278 + $0x58] sm:$0xff]
      %v615 = vld [vmem:[%s278 + $0x60] sm:$0xff]
      %v616 = vld [vmem:[%s278 + $0x68] sm:$0xff]
      %v617 = vld [vmem:[%s278 + $0x70] sm:$0xff]
      %v618 = vld [vmem:[%s278 + $0x78] sm:$0xff]
      %619 = vmatpush.msra.mxu0 %v618
      %620 = vmatpush.msra.mxu0 %v617
      %621 = vmatpush.msra.mxu0 %v616
      %622 = vmatpush.msra.mxu0 %v615
      %623 = vmatpush.msra.mxu0 %v614
      %624 = vmatpush.msra.mxu0 %v613
      %625 = vmatpush.msra.mxu0 %v612
      %626 = vmatpush.msra.mxu0 %v611
      %627 = vmatpush.msra.mxu0 %v610
      %628 = vmatpush.msra.mxu0 %v609
      %629 = vmatpush.msra.mxu0 %v608
      %630 = vmatpush.msra.mxu0 %v607
      %631 = vmatpush.msra.mxu0 %v606
      %632 = vmatpush.msra.mxu0 %v605
      %633 = vmatpush.msra.mxu0 %v604
      %634 = vmatpush.msra.mxu0 %v603
      %635 = vmatmul.f32.gmra.mxu0 %v571
      %v636 = vpop.f32.mrf.mxu0
      %v637 = vadd.f32 0.0, %v636
      %638 = vmatmul.f32.gmra.mxu0 %v572
      %v639 = vpop.f32.mrf.mxu0
      %v640 = vadd.f32 0.0, %v639
      %641 = vmatmul.f32.gmra.mxu0 %v573
      %v642 = vpop.f32.mrf.mxu0
      %v643 = vadd.f32 0.0, %v642
      %644 = vmatmul.f32.gmra.mxu0 %v574
      %v645 = vpop.f32.mrf.mxu0
      %v646 = vadd.f32 0.0, %v645
      %647 = vmatmul.f32.gmra.mxu0 %v575
      %v648 = vpop.f32.mrf.mxu0
      %v649 = vadd.f32 0.0, %v648
      %650 = vmatmul.f32.gmra.mxu0 %v576
      %v651 = vpop.f32.mrf.mxu0
      %v652 = vadd.f32 0.0, %v651
      %653 = vmatmul.f32.gmra.mxu0 %v577
      %v654 = vpop.f32.mrf.mxu0
      %v655 = vadd.f32 0.0, %v654
      %656 = vmatmul.f32.gmra.mxu0 %v578
      %v657 = vpop.f32.mrf.mxu0
      %v658 = vadd.f32 0.0, %v657
      %659 = vmatmul.f32.gmra.mxu0 %v579
      %v660 = vpop.f32.mrf.mxu0
      %v661 = vadd.f32 0.0, %v660
      %662 = vmatmul.f32.gmra.mxu0 %v580
      %v663 = vpop.f32.mrf.mxu0
      %v664 = vadd.f32 0.0, %v663
      %665 = vmatmul.f32.gmra.mxu0 %v581
      %v666 = vpop.f32.mrf.mxu0
      %v667 = vadd.f32 0.0, %v666
      %668 = vmatmul.f32.gmra.mxu0 %v582
      %v669 = vpop.f32.mrf.mxu0
      %v670 = vadd.f32 0.0, %v669
      %671 = vmatmul.f32.gmra.mxu0 %v583
      %v672 = vpop.f32.mrf.mxu0
      %v673 = vadd.f32 0.0, %v672
      %674 = vmatmul.f32.gmra.mxu0 %v584
      %v675 = vpop.f32.mrf.mxu0
      %v676 = vadd.f32 0.0, %v675
      %677 = vmatmul.f32.gmra.mxu0 %v585
      %v678 = vpop.f32.mrf.mxu0
      %v679 = vadd.f32 0.0, %v678
      %680 = vmatmul.f32.gmra.mxu0 %v586
      %v681 = vpop.f32.mrf.mxu0
      %v682 = vadd.f32 0.0, %v681
      %683 = vmatmul.f32.gmra.mxu0 %v587
      %v684 = vpop.f32.mrf.mxu0
      %v685 = vadd.f32 0.0, %v684
      %686 = vmatmul.f32.gmra.mxu0 %v588
      %v687 = vpop.f32.mrf.mxu0
      %v688 = vadd.f32 0.0, %v687
      %689 = vmatmul.f32.gmra.mxu0 %v589
      %v690 = vpop.f32.mrf.mxu0
      %v691 = vadd.f32 0.0, %v690
      %692 = vmatmul.f32.gmra.mxu0 %v590
      %v693 = vpop.f32.mrf.mxu0
      %v694 = vadd.f32 0.0, %v693
      %695 = vmatmul.f32.gmra.mxu0 %v591
      %v696 = vpop.f32.mrf.mxu0
      %v697 = vadd.f32 0.0, %v696
      %698 = vmatmul.f32.gmra.mxu0 %v592
      %v699 = vpop.f32.mrf.mxu0
      %v700 = vadd.f32 0.0, %v699
      %701 = vmatmul.f32.gmra.mxu0 %v593
      %v702 = vpop.f32.mrf.mxu0
      %v703 = vadd.f32 0.0, %v702
      %704 = vmatmul.f32.gmra.mxu0 %v594
      %v705 = vpop.f32.mrf.mxu0
      %v706 = vadd.f32 0.0, %v705
      %707 = vmatmul.f32.gmra.mxu0 %v595
      %v708 = vpop.f32.mrf.mxu0
      %v709 = vadd.f32 0.0, %v708
      %710 = vmatmul.f32.gmra.mxu0 %v596
      %v711 = vpop.f32.mrf.mxu0
      %v712 = vadd.f32 0.0, %v711
      %713 = vmatmul.f32.gmra.mxu0 %v597
      %v714 = vpop.f32.mrf.mxu0
      %v715 = vadd.f32 0.0, %v714
      %716 = vmatmul.f32.gmra.mxu0 %v598
      %v717 = vpop.f32.mrf.mxu0
      %v718 = vadd.f32 0.0, %v717
      %719 = vmatmul.f32.gmra.mxu0 %v599
      %v720 = vpop.f32.mrf.mxu0
      %v721 = vadd.f32 0.0, %v720
      %722 = vmatmul.f32.gmra.mxu0 %v600
      %v723 = vpop.f32.mrf.mxu0
      %v724 = vadd.f32 0.0, %v723
      %725 = vmatmul.f32.gmra.mxu0 %v601
      %v726 = vpop.f32.mrf.mxu0
      %v727 = vadd.f32 0.0, %v726
      %728 = vmatmul.f32.gmra.mxu0 %v602
      %v729 = vpop.f32.mrf.mxu0
      %v730 = vadd.f32 0.0, %v729
      %731 = vdwg.mxu0
      %v732 = vadd.f32 %v637, %v640
      %v733 = vadd.f32 %v732, %v643
      %v734 = vadd.f32 %v733, %v646
      %v735 = vadd.f32 %v734, %v649
      %v736 = vadd.f32 %v735, %v652
      %v737 = vadd.f32 %v736, %v655
      %v738 = vadd.f32 %v737, %v658
      %v739 = vadd.f32 %v738, %v661
      %v740 = vadd.f32 %v739, %v664
      %v741 = vadd.f32 %v740, %v667
      %v742 = vadd.f32 %v741, %v670
      %v743 = vadd.f32 %v742, %v673
      %v744 = vadd.f32 %v743, %v676
      %v745 = vadd.f32 %v744, %v679
      %v746 = vadd.f32 %v745, %v682
      %v747 = vrot.slane %v746, 4
      %v748 = vadd.f32 %v746, %v747
      %v749 = vrot.slane %v748, 2
      %v750 = vadd.f32 %v748, %v749
      %v751 = vrot.slane %v750, 1
      %v752 = vadd.f32 %v750, %v751
      %v753 = vadd.f32 %v685, %v688
      %v754 = vadd.f32 %v753, %v691
      %v755 = vadd.f32 %v754, %v694
      %v756 = vadd.f32 %v755, %v697
      %v757 = vadd.f32 %v756, %v700
      %v758 = vadd.f32 %v757, %v703
      %v759 = vadd.f32 %v758, %v706
      %v760 = vadd.f32 %v759, %v709
      %v761 = vadd.f32 %v760, %v712
      %v762 = vadd.f32 %v761, %v715
      %v763 = vadd.f32 %v762, %v718
      %v764 = vadd.f32 %v763, %v721
      %v765 = vadd.f32 %v764, %v724
      %v766 = vadd.f32 %v765, %v727
      %v767 = vadd.f32 %v766, %v730
      %v768 = vrot.slane %v767, 4
      %v769 = vadd.f32 %v767, %v768
      %v770 = vrot.slane %v769, 2
      %v771 = vadd.f32 %v769, %v770
      %v772 = vrot.slane %v771, 1
      %v773 = vadd.f32 %v771, %v772
      %v774 = vrcp.pop 128.0
      %v775 = vmul.f32 128.0, %v774
      %v776 = vsub.f32 1.0, %v775
      %v777 = vmul.f32 %v774, %v776
      %v778 = vadd.f32 %v774, %v777
      %vm779 = vweird.f32 %v774
      %v780 = vsel %vm779, %v774, %v778
      %v781 = vmul.f32 %v752, %v780
      %v782 = vmul.f32 %v773, %v780
      %v783 = vmul.f32 %v637, %v637
      %v784 = vmul.f32 %v640, %v640
      %v785 = vmul.f32 %v643, %v643
      %v786 = vmul.f32 %v646, %v646
      %v787 = vmul.f32 %v649, %v649
      %v788 = vmul.f32 %v652, %v652
      %v789 = vmul.f32 %v655, %v655
      %v790 = vmul.f32 %v658, %v658
      %v791 = vmul.f32 %v661, %v661
      %v792 = vmul.f32 %v664, %v664
      %v793 = vmul.f32 %v667, %v667
      %v794 = vmul.f32 %v670, %v670
      %v795 = vmul.f32 %v673, %v673
      %v796 = vmul.f32 %v676, %v676
      %v797 = vmul.f32 %v679, %v679
      %v798 = vmul.f32 %v682, %v682
      %v799 = vmul.f32 %v685, %v685
      %v800 = vmul.f32 %v688, %v688
      %v801 = vmul.f32 %v691, %v691
      %v802 = vmul.f32 %v694, %v694
      %v803 = vmul.f32 %v697, %v697
      %v804 = vmul.f32 %v700, %v700
      %v805 = vmul.f32 %v703, %v703
      %v806 = vmul.f32 %v706, %v706
      %v807 = vmul.f32 %v709, %v709
      %v808 = vmul.f32 %v712, %v712
      %v809 = vmul.f32 %v715, %v715
      %v810 = vmul.f32 %v718, %v718
      %v811 = vmul.f32 %v721, %v721
      %v812 = vmul.f32 %v724, %v724
      %v813 = vmul.f32 %v727, %v727
      %v814 = vmul.f32 %v730, %v730
      %v815 = vadd.f32 %v783, %v784
      %v816 = vadd.f32 %v815, %v785
      %v817 = vadd.f32 %v816, %v786
      %v818 = vadd.f32 %v817, %v787
      %v819 = vadd.f32 %v818, %v788
      %v820 = vadd.f32 %v819, %v789
      %v821 = vadd.f32 %v820, %v790
      %v822 = vadd.f32 %v821, %v791
      %v823 = vadd.f32 %v822, %v792
      %v824 = vadd.f32 %v823, %v793
      %v825 = vadd.f32 %v824, %v794
      %v826 = vadd.f32 %v825, %v795
      %v827 = vadd.f32 %v826, %v796
      %v828 = vadd.f32 %v827, %v797
      %v829 = vadd.f32 %v828, %v798
      %v830 = vrot.slane %v829, 4
      %v831 = vadd.f32 %v829, %v830
      %v832 = vrot.slane %v831, 2
      %v833 = vadd.f32 %v831, %v832
      %v834 = vrot.slane %v833, 1
      %v835 = vadd.f32 %v833, %v834
      %v836 = vadd.f32 %v799, %v800
      %v837 = vadd.f32 %v836, %v801
      %v838 = vadd.f32 %v837, %v802
      %v839 = vadd.f32 %v838, %v803
      %v840 = vadd.f32 %v839, %v804
      %v841 = vadd.f32 %v840, %v805
      %v842 = vadd.f32 %v841, %v806
      %v843 = vadd.f32 %v842, %v807
      %v844 = vadd.f32 %v843, %v808
      %v845 = vadd.f32 %v844, %v809
      %v846 = vadd.f32 %v845, %v810
      %v847 = vadd.f32 %v846, %v811
      %v848 = vadd.f32 %v847, %v812
      %v849 = vadd.f32 %v848, %v813
      %v850 = vadd.f32 %v849, %v814
      %v851 = vrot.slane %v850, 4
      %v852 = vadd.f32 %v850, %v851
      %v853 = vrot.slane %v852, 2
      %v854 = vadd.f32 %v852, %v853
      %v855 = vrot.slane %v854, 1
      %v856 = vadd.f32 %v854, %v855
      %v857 = vmul.f32 %v835, %v780
      %v858 = vmul.f32 %v856, %v780
      %v859 = vmul.f32 %v781, %v781
      %v860 = vmul.f32 %v782, %v782
      %v861 = vsub.f32 %v857, %v859
      %v862 = vsub.f32 %v858, %v860
      %v863 = vmax.f32 %v861, 0.0
      %v864 = vmax.f32 %v862, 0.0
      %v865 = vadd.f32 %v863, 1e-05
      %v866 = vadd.f32 %v864, 1e-05
      %v867 = vrsqrt.pop %v865
      %v868 = vmul.f32 %v867, %v865
      %v869 = vmul.f32 %v868, %v867
      %v870 = vmul.f32 0.5, %v869
      %v871 = vsub.f32 1.5, %v870
      %v872 = vmul.f32 %v867, %v871
      %vm873 = vweird.f32 %v865
      %vm874 = vweird.f32 %v867
      %vm875 = vmor %vm873, %vm874
      %v876 = vsel %vm875, %v867, %v872
      %v877 = vrsqrt.pop %v866
      %v878 = vmul.f32 %v877, %v866
      %v879 = vmul.f32 %v878, %v877
      %v880 = vmul.f32 0.5, %v879
      %v881 = vsub.f32 1.5, %v880
      %v882 = vmul.f32 %v877, %v881
      %vm883 = vweird.f32 %v866
      %vm884 = vweird.f32 %v877
      %vm885 = vmor %vm883, %vm884
      %v886 = vsel %vm885, %v877, %v882
      %v887 = vmul.f32 %v863, %v876
      %v888 = vmul.f32 %v864, %v886
      %v889 = vmul.f32 %v887, %v876
      %v890 = vmul.f32 %v888, %v886
      %v891 = vadd.f32 %v889, %v890
      %v892 = vrcp.pop 2.0
      %v893 = vmul.f32 2.0, %v892
      %v894 = vsub.f32 1.0, %v893
      %v895 = vmul.f32 %v892, %v894
      %v896 = vadd.f32 %v892, %v895
      %vm897 = vweird.f32 %v892
      %v898 = vsel %vm897, %v892, %v896
      %v899 = vmul.f32 %v891, %v898
      %v900 = vadd.f32 %v899, 1e-05
      %v901 = vrsqrt.pop %v900
      %v902 = vmul.f32 %v901, %v900
      %v903 = vmul.f32 %v902, %v901
      %v904 = vmul.f32 0.5, %v903
      %v905 = vsub.f32 1.5, %v904
      %v906 = vmul.f32 %v901, %v905
      %vm907 = vweird.f32 %v900
      %vm908 = vweird.f32 %v901
      %vm909 = vmor %vm907, %vm908
      %v910 = vsel %vm909, %v901, %v906
      %v911 = vmul.f32 %v876, %v910
      %v912 = vmul.f32 %v886, %v910
      %v913 = vsub.f32 %v637, %v781
      %v914 = vsub.f32 %v640, %v781
      %v915 = vsub.f32 %v643, %v781
      %v916 = vsub.f32 %v646, %v781
      %v917 = vsub.f32 %v649, %v781
      %v918 = vsub.f32 %v652, %v781
      %v919 = vsub.f32 %v655, %v781
      %v920 = vsub.f32 %v658, %v781
      %v921 = vsub.f32 %v661, %v781
      %v922 = vsub.f32 %v664, %v781
      %v923 = vsub.f32 %v667, %v781
      %v924 = vsub.f32 %v670, %v781
      %v925 = vsub.f32 %v673, %v781
      %v926 = vsub.f32 %v676, %v781
      %v927 = vsub.f32 %v679, %v781
      %v928 = vsub.f32 %v682, %v781
      %v929 = vsub.f32 %v685, %v782
      %v930 = vsub.f32 %v688, %v782
      %v931 = vsub.f32 %v691, %v782
      %v932 = vsub.f32 %v694, %v782
      %v933 = vsub.f32 %v697, %v782
      %v934 = vsub.f32 %v700, %v782
      %v935 = vsub.f32 %v703, %v782
      %v936 = vsub.f32 %v706, %v782
      %v937 = vsub.f32 %v709, %v782
      %v938 = vsub.f32 %v712, %v782
      %v939 = vsub.f32 %v715, %v782
      %v940 = vsub.f32 %v718, %v782
      %v941 = vsub.f32 %v721, %v782
      %v942 = vsub.f32 %v724, %v782
      %v943 = vsub.f32 %v727, %v782
      %v944 = vsub.f32 %v730, %v782
      %v945 = vmul.f32 %v913, %v911
      %v946 = vmul.f32 %v914, %v911
      %v947 = vmul.f32 %v915, %v911
      %v948 = vmul.f32 %v916, %v911
      %v949 = vmul.f32 %v917, %v911
      %v950 = vmul.f32 %v918, %v911
      %v951 = vmul.f32 %v919, %v911
      %v952 = vmul.f32 %v920, %v911
      %v953 = vmul.f32 %v921, %v911
      %v954 = vmul.f32 %v922, %v911
      %v955 = vmul.f32 %v923, %v911
      %v956 = vmul.f32 %v924, %v911
      %v957 = vmul.f32 %v925, %v911
      %v958 = vmul.f32 %v926, %v911
      %v959 = vmul.f32 %v927, %v911
      %v960 = vmul.f32 %v928, %v911
      %v961 = vmul.f32 %v929, %v912
      %v962 = vmul.f32 %v930, %v912
      %v963 = vmul.f32 %v931, %v912
      %v964 = vmul.f32 %v932, %v912
      %v965 = vmul.f32 %v933, %v912
      %v966 = vmul.f32 %v934, %v912
      %v967 = vmul.f32 %v935, %v912
      %v968 = vmul.f32 %v936, %v912
      %v969 = vmul.f32 %v937, %v912
      %v970 = vmul.f32 %v938, %v912
      %v971 = vmul.f32 %v939, %v912
      %v972 = vmul.f32 %v940, %v912
      %v973 = vmul.f32 %v941, %v912
      %v974 = vmul.f32 %v942, %v912
      %v975 = vmul.f32 %v943, %v912
      %v976 = vmul.f32 %v944, %v912
      %v977 = vmax.f32 %v945, 0.0
      %v978 = vmax.f32 %v946, 0.0
      %v979 = vmax.f32 %v947, 0.0
      %v980 = vmax.f32 %v948, 0.0
      %v981 = vmax.f32 %v949, 0.0
      %v982 = vmax.f32 %v950, 0.0
      %v983 = vmax.f32 %v951, 0.0
      %v984 = vmax.f32 %v952, 0.0
      %v985 = vmax.f32 %v953, 0.0
      %v986 = vmax.f32 %v954, 0.0
      %v987 = vmax.f32 %v955, 0.0
      %v988 = vmax.f32 %v956, 0.0
      %v989 = vmax.f32 %v957, 0.0
      %v990 = vmax.f32 %v958, 0.0
      %v991 = vmax.f32 %v959, 0.0
      %v992 = vmax.f32 %v960, 0.0
      %v993 = vmax.f32 %v961, 0.0
      %v994 = vmax.f32 %v962, 0.0
      %v995 = vmax.f32 %v963, 0.0
      %v996 = vmax.f32 %v964, 0.0
      %v997 = vmax.f32 %v965, 0.0
      %v998 = vmax.f32 %v966, 0.0
      %v999 = vmax.f32 %v967, 0.0
      %v1000 = vmax.f32 %v968, 0.0
      %v1001 = vmax.f32 %v969, 0.0
      %v1002 = vmax.f32 %v970, 0.0
      %v1003 = vmax.f32 %v971, 0.0
      %v1004 = vmax.f32 %v972, 0.0
      %v1005 = vmax.f32 %v973, 0.0
      %v1006 = vmax.f32 %v974, 0.0
      %v1007 = vmax.f32 %v975, 0.0
      %v1008 = vmax.f32 %v976, 0.0
      %v1009 = vld [vmem:[%s283] sm:$0xff]
      %v1010 = vld [vmem:[%s283 + $0x8] sm:$0xff]
      %v1011 = vld [vmem:[%s283 + $0x10] sm:$0xff]
      %v1012 = vld [vmem:[%s283 + $0x18] sm:$0xff]
      %v1013 = vld [vmem:[%s283 + $0x20] sm:$0xff]
      %v1014 = vld [vmem:[%s283 + $0x28] sm:$0xff]
      %v1015 = vld [vmem:[%s283 + $0x30] sm:$0xff]
      %v1016 = vld [vmem:[%s283 + $0x38] sm:$0xff]
      %v1017 = vld [vmem:[%s283 + $0x40] sm:$0xff]
      %v1018 = vld [vmem:[%s283 + $0x48] sm:$0xff]
      %v1019 = vld [vmem:[%s283 + $0x50] sm:$0xff]
      %v1020 = vld [vmem:[%s283 + $0x58] sm:$0xff]
      %v1021 = vld [vmem:[%s283 + $0x60] sm:$0xff]
      %v1022 = vld [vmem:[%s283 + $0x68] sm:$0xff]
      %v1023 = vld [vmem:[%s283 + $0x70] sm:$0xff]
      %v1024 = vld [vmem:[%s283 + $0x78] sm:$0xff]
      %1025 = vmatpush.msra.mxu0 %v1024
      %1026 = vmatpush.msra.mxu0 %v1023
      %1027 = vmatpush.msra.mxu0 %v1022
      %1028 = vmatpush.msra.mxu0 %v1021
      %1029 = vmatpush.msra.mxu0 %v1020
      %1030 = vmatpush.msra.mxu0 %v1019
      %1031 = vmatpush.msra.mxu0 %v1018
      %1032 = vmatpush.msra.mxu0 %v1017
      %1033 = vmatpush.msra.mxu0 %v1016
      %1034 = vmatpush.msra.mxu0 %v1015
      %1035 = vmatpush.msra.mxu0 %v1014
      %1036 = vmatpush.msra.mxu0 %v1013
      %1037 = vmatpush.msra.mxu0 %v1012
      %1038 = vmatpush.msra.mxu0 %v1011
      %1039 = vmatpush.msra.mxu0 %v1010
      %1040 = vmatpush.msra.mxu0 %v1009
      %1041 = vmatmul.f32.gmra.mxu0 %v977
      %v1042 = vpop.f32.mrf.mxu0
      %v1043 = vadd.f32 0.0, %v1042
      %1044 = vmatmul.f32.gmra.mxu0 %v978
      %v1045 = vpop.f32.mrf.mxu0
      %v1046 = vadd.f32 0.0, %v1045
      %1047 = vmatmul.f32.gmra.mxu0 %v979
      %v1048 = vpop.f32.mrf.mxu0
      %v1049 = vadd.f32 0.0, %v1048
      %1050 = vmatmul.f32.gmra.mxu0 %v980
      %v1051 = vpop.f32.mrf.mxu0
      %v1052 = vadd.f32 0.0, %v1051
      %1053 = vmatmul.f32.gmra.mxu0 %v981
      %v1054 = vpop.f32.mrf.mxu0
      %v1055 = vadd.f32 0.0, %v1054
      %1056 = vmatmul.f32.gmra.mxu0 %v982
      %v1057 = vpop.f32.mrf.mxu0
      %v1058 = vadd.f32 0.0, %v1057
      %1059 = vmatmul.f32.gmra.mxu0 %v983
      %v1060 = vpop.f32.mrf.mxu0
      %v1061 = vadd.f32 0.0, %v1060
      %1062 = vmatmul.f32.gmra.mxu0 %v984
      %v1063 = vpop.f32.mrf.mxu0
      %v1064 = vadd.f32 0.0, %v1063
      %1065 = vmatmul.f32.gmra.mxu0 %v985
      %v1066 = vpop.f32.mrf.mxu0
      %v1067 = vadd.f32 0.0, %v1066
      %1068 = vmatmul.f32.gmra.mxu0 %v986
      %v1069 = vpop.f32.mrf.mxu0
      %v1070 = vadd.f32 0.0, %v1069
      %1071 = vmatmul.f32.gmra.mxu0 %v987
      %v1072 = vpop.f32.mrf.mxu0
      %v1073 = vadd.f32 0.0, %v1072
      %1074 = vmatmul.f32.gmra.mxu0 %v988
      %v1075 = vpop.f32.mrf.mxu0
      %v1076 = vadd.f32 0.0, %v1075
      %1077 = vmatmul.f32.gmra.mxu0 %v989
      %v1078 = vpop.f32.mrf.mxu0
      %v1079 = vadd.f32 0.0, %v1078
      %1080 = vmatmul.f32.gmra.mxu0 %v990
      %v1081 = vpop.f32.mrf.mxu0
      %v1082 = vadd.f32 0.0, %v1081
      %1083 = vmatmul.f32.gmra.mxu0 %v991
      %v1084 = vpop.f32.mrf.mxu0
      %v1085 = vadd.f32 0.0, %v1084
      %1086 = vmatmul.f32.gmra.mxu0 %v992
      %v1087 = vpop.f32.mrf.mxu0
      %v1088 = vadd.f32 0.0, %v1087
      %1089 = vmatmul.f32.gmra.mxu0 %v993
      %v1090 = vpop.f32.mrf.mxu0
      %v1091 = vadd.f32 0.0, %v1090
      %1092 = vmatmul.f32.gmra.mxu0 %v994
      %v1093 = vpop.f32.mrf.mxu0
      %v1094 = vadd.f32 0.0, %v1093
      %1095 = vmatmul.f32.gmra.mxu0 %v995
      %v1096 = vpop.f32.mrf.mxu0
      %v1097 = vadd.f32 0.0, %v1096
      %1098 = vmatmul.f32.gmra.mxu0 %v996
      %v1099 = vpop.f32.mrf.mxu0
      %v1100 = vadd.f32 0.0, %v1099
      %1101 = vmatmul.f32.gmra.mxu0 %v997
      %v1102 = vpop.f32.mrf.mxu0
      %v1103 = vadd.f32 0.0, %v1102
      %1104 = vmatmul.f32.gmra.mxu0 %v998
      %v1105 = vpop.f32.mrf.mxu0
      %v1106 = vadd.f32 0.0, %v1105
      %1107 = vmatmul.f32.gmra.mxu0 %v999
      %v1108 = vpop.f32.mrf.mxu0
      %v1109 = vadd.f32 0.0, %v1108
      %1110 = vmatmul.f32.gmra.mxu0 %v1000
      %v1111 = vpop.f32.mrf.mxu0
      %v1112 = vadd.f32 0.0, %v1111
      %1113 = vmatmul.f32.gmra.mxu0 %v1001
      %v1114 = vpop.f32.mrf.mxu0
      %v1115 = vadd.f32 0.0, %v1114
      %1116 = vmatmul.f32.gmra.mxu0 %v1002
      %v1117 = vpop.f32.mrf.mxu0
      %v1118 = vadd.f32 0.0, %v1117
      %1119 = vmatmul.f32.gmra.mxu0 %v1003
      %v1120 = vpop.f32.mrf.mxu0
      %v1121 = vadd.f32 0.0, %v1120
      %1122 = vmatmul.f32.gmra.mxu0 %v1004
      %v1123 = vpop.f32.mrf.mxu0
      %v1124 = vadd.f32 0.0, %v1123
      %1125 = vmatmul.f32.gmra.mxu0 %v1005
      %v1126 = vpop.f32.mrf.mxu0
      %v1127 = vadd.f32 0.0, %v1126
      %1128 = vmatmul.f32.gmra.mxu0 %v1006
      %v1129 = vpop.f32.mrf.mxu0
      %v1130 = vadd.f32 0.0, %v1129
      %1131 = vmatmul.f32.gmra.mxu0 %v1007
      %v1132 = vpop.f32.mrf.mxu0
      %v1133 = vadd.f32 0.0, %v1132
      %1134 = vmatmul.f32.gmra.mxu0 %v1008
      %v1135 = vpop.f32.mrf.mxu0
      %v1136 = vadd.f32 0.0, %v1135
      %1137 = vdwg.mxu0
      %v1138 = vadd.f32 %v1043, %v1046
      %v1139 = vadd.f32 %v1138, %v1049
      %v1140 = vadd.f32 %v1139, %v1052
      %v1141 = vadd.f32 %v1140, %v1055
      %v1142 = vadd.f32 %v1141, %v1058
      %v1143 = vadd.f32 %v1142, %v1061
      %v1144 = vadd.f32 %v1143, %v1064
      %v1145 = vadd.f32 %v1144, %v1067
      %v1146 = vadd.f32 %v1145, %v1070
      %v1147 = vadd.f32 %v1146, %v1073
      %v1148 = vadd.f32 %v1147, %v1076
      %v1149 = vadd.f32 %v1148, %v1079
      %v1150 = vadd.f32 %v1149, %v1082
      %v1151 = vadd.f32 %v1150, %v1085
      %v1152 = vadd.f32 %v1151, %v1088
      %v1153 = vrot.slane %v1152, 4
      %v1154 = vadd.f32 %v1152, %v1153
      %v1155 = vrot.slane %v1154, 2
      %v1156 = vadd.f32 %v1154, %v1155
      %v1157 = vrot.slane %v1156, 1
      %v1158 = vadd.f32 %v1156, %v1157
      %v1159 = vadd.f32 %v1091, %v1094
      %v1160 = vadd.f32 %v1159, %v1097
      %v1161 = vadd.f32 %v1160, %v1100
      %v1162 = vadd.f32 %v1161, %v1103
      %v1163 = vadd.f32 %v1162, %v1106
      %v1164 = vadd.f32 %v1163, %v1109
      %v1165 = vadd.f32 %v1164, %v1112
      %v1166 = vadd.f32 %v1165, %v1115
      %v1167 = vadd.f32 %v1166, %v1118
      %v1168 = vadd.f32 %v1167, %v1121
      %v1169 = vadd.f32 %v1168, %v1124
      %v1170 = vadd.f32 %v1169, %v1127
      %v1171 = vadd.f32 %v1170, %v1130
      %v1172 = vadd.f32 %v1171, %v1133
      %v1173 = vadd.f32 %v1172, %v1136
      %v1174 = vrot.slane %v1173, 4
      %v1175 = vadd.f32 %v1173, %v1174
      %v1176 = vrot.slane %v1175, 2
      %v1177 = vadd.f32 %v1175, %v1176
      %v1178 = vrot.slane %v1177, 1
      %v1179 = vadd.f32 %v1177, %v1178
      %v1180 = vmul.f32 %v1158, %v780
      %v1181 = vmul.f32 %v1179, %v780
      %v1182 = vmul.f32 %v1043, %v1043
      %v1183 = vmul.f32 %v1046, %v1046
      %v1184 = vmul.f32 %v1049, %v1049
      %v1185 = vmul.f32 %v1052, %v1052
      %v1186 = vmul.f32 %v1055, %v1055
      %v1187 = vmul.f32 %v1058, %v1058
      %v1188 = vmul.f32 %v1061, %v1061
      %v1189 = vmul.f32 %v1064, %v1064
      %v1190 = vmul.f32 %v1067, %v1067
      %v1191 = vmul.f32 %v1070, %v1070
      %v1192 = vmul.f32 %v1073, %v1073
      %v1193 = vmul.f32 %v1076, %v1076
      %v1194 = vmul.f32 %v1079, %v1079
      %v1195 = vmul.f32 %v1082, %v1082
      %v1196 = vmul.f32 %v1085, %v1085
      %v1197 = vmul.f32 %v1088, %v1088
      %v1198 = vmul.f32 %v1091, %v1091
      %v1199 = vmul.f32 %v1094, %v1094
      %v1200 = vmul.f32 %v1097, %v1097
      %v1201 = vmul.f32 %v1100, %v1100
      %v1202 = vmul.f32 %v1103, %v1103
      %v1203 = vmul.f32 %v1106, %v1106
      %v1204 = vmul.f32 %v1109, %v1109
      %v1205 = vmul.f32 %v1112, %v1112
      %v1206 = vmul.f32 %v1115, %v1115
      %v1207 = vmul.f32 %v1118, %v1118
      %v1208 = vmul.f32 %v1121, %v1121
      %v1209 = vmul.f32 %v1124, %v1124
      %v1210 = vmul.f32 %v1127, %v1127
      %v1211 = vmul.f32 %v1130, %v1130
      %v1212 = vmul.f32 %v1133, %v1133
      %v1213 = vmul.f32 %v1136, %v1136
      %v1214 = vadd.f32 %v1182, %v1183
      %v1215 = vadd.f32 %v1214, %v1184
      %v1216 = vadd.f32 %v1215, %v1185
      %v1217 = vadd.f32 %v1216, %v1186
      %v1218 = vadd.f32 %v1217, %v1187
      %v1219 = vadd.f32 %v1218, %v1188
      %v1220 = vadd.f32 %v1219, %v1189
      %v1221 = vadd.f32 %v1220, %v1190
      %v1222 = vadd.f32 %v1221, %v1191
      %v1223 = vadd.f32 %v1222, %v1192
      %v1224 = vadd.f32 %v1223, %v1193
      %v1225 = vadd.f32 %v1224, %v1194
      %v1226 = vadd.f32 %v1225, %v1195
      %v1227 = vadd.f32 %v1226, %v1196
      %v1228 = vadd.f32 %v1227, %v1197
      %v1229 = vrot.slane %v1228, 4
      %v1230 = vadd.f32 %v1228, %v1229
      %v1231 = vrot.slane %v1230, 2
      %v1232 = vadd.f32 %v1230, %v1231
      %v1233 = vrot.slane %v1232, 1
      %v1234 = vadd.f32 %v1232, %v1233
      %v1235 = vadd.f32 %v1198, %v1199
      %v1236 = vadd.f32 %v1235, %v1200
      %v1237 = vadd.f32 %v1236, %v1201
      %v1238 = vadd.f32 %v1237, %v1202
      %v1239 = vadd.f32 %v1238, %v1203
      %v1240 = vadd.f32 %v1239, %v1204
      %v1241 = vadd.f32 %v1240, %v1205
      %v1242 = vadd.f32 %v1241, %v1206
      %v1243 = vadd.f32 %v1242, %v1207
      %v1244 = vadd.f32 %v1243, %v1208
      %v1245 = vadd.f32 %v1244, %v1209
      %v1246 = vadd.f32 %v1245, %v1210
      %v1247 = vadd.f32 %v1246, %v1211
      %v1248 = vadd.f32 %v1247, %v1212
      %v1249 = vadd.f32 %v1248, %v1213
      %v1250 = vrot.slane %v1249, 4
      %v1251 = vadd.f32 %v1249, %v1250
      %v1252 = vrot.slane %v1251, 2
      %v1253 = vadd.f32 %v1251, %v1252
      %v1254 = vrot.slane %v1253, 1
      %v1255 = vadd.f32 %v1253, %v1254
      %v1256 = vmul.f32 %v1234, %v780
      %v1257 = vmul.f32 %v1255, %v780
      %v1258 = vmul.f32 %v1180, %v1180
      %v1259 = vmul.f32 %v1181, %v1181
      %v1260 = vsub.f32 %v1256, %v1258
      %v1261 = vsub.f32 %v1257, %v1259
      %v1262 = vmax.f32 %v1260, 0.0
      %v1263 = vmax.f32 %v1261, 0.0
      %v1264 = vadd.f32 %v1262, 1e-05
      %v1265 = vadd.f32 %v1263, 1e-05
      %v1266 = vrsqrt.pop %v1264
      %v1267 = vmul.f32 %v1266, %v1264
      %v1268 = vmul.f32 %v1267, %v1266
      %v1269 = vmul.f32 0.5, %v1268
      %v1270 = vsub.f32 1.5, %v1269
      %v1271 = vmul.f32 %v1266, %v1270
      %vm1272 = vweird.f32 %v1264
      %vm1273 = vweird.f32 %v1266
      %vm1274 = vmor %vm1272, %vm1273
      %v1275 = vsel %vm1274, %v1266, %v1271
      %v1276 = vrsqrt.pop %v1265
      %v1277 = vmul.f32 %v1276, %v1265
      %v1278 = vmul.f32 %v1277, %v1276
      %v1279 = vmul.f32 0.5, %v1278
      %v1280 = vsub.f32 1.5, %v1279
      %v1281 = vmul.f32 %v1276, %v1280
      %vm1282 = vweird.f32 %v1265
      %vm1283 = vweird.f32 %v1276
      %vm1284 = vmor %vm1282, %vm1283
      %v1285 = vsel %vm1284, %v1276, %v1281
      %v1286 = vmul.f32 %v1262, %v1275
      %v1287 = vmul.f32 %v1263, %v1285
      %v1288 = vmul.f32 %v1286, %v1275
      %v1289 = vmul.f32 %v1287, %v1285
      %v1290 = vadd.f32 %v1288, %v1289
      %v1291 = vmul.f32 %v1290, %v898
      %v1292 = vadd.f32 %v1291, 1e-05
      %v1293 = vrsqrt.pop %v1292
      %v1294 = vmul.f32 %v1293, %v1292
      %v1295 = vmul.f32 %v1294, %v1293
      %v1296 = vmul.f32 0.5, %v1295
      %v1297 = vsub.f32 1.5, %v1296
      %v1298 = vmul.f32 %v1293, %v1297
      %vm1299 = vweird.f32 %v1292
      %vm1300 = vweird.f32 %v1293
      %vm1301 = vmor %vm1299, %vm1300
      %v1302 = vsel %vm1301, %v1293, %v1298
      %v1303 = vmul.f32 %v1275, %v1302
      %v1304 = vmul.f32 %v1285, %v1302
      %v1305 = vsub.f32 %v1043, %v1180
      %v1306 = vsub.f32 %v1046, %v1180
      %v1307 = vsub.f32 %v1049, %v1180
      %v1308 = vsub.f32 %v1052, %v1180
      %v1309 = vsub.f32 %v1055, %v1180
      %v1310 = vsub.f32 %v1058, %v1180
      %v1311 = vsub.f32 %v1061, %v1180
      %v1312 = vsub.f32 %v1064, %v1180
      %v1313 = vsub.f32 %v1067, %v1180
      %v1314 = vsub.f32 %v1070, %v1180
      %v1315 = vsub.f32 %v1073, %v1180
      %v1316 = vsub.f32 %v1076, %v1180
      %v1317 = vsub.f32 %v1079, %v1180
      %v1318 = vsub.f32 %v1082, %v1180
      %v1319 = vsub.f32 %v1085, %v1180
      %v1320 = vsub.f32 %v1088, %v1180
      %v1321 = vsub.f32 %v1091, %v1181
      %v1322 = vsub.f32 %v1094, %v1181
      %v1323 = vsub.f32 %v1097, %v1181
      %v1324 = vsub.f32 %v1100, %v1181
      %v1325 = vsub.f32 %v1103, %v1181
      %v1326 = vsub.f32 %v1106, %v1181
      %v1327 = vsub.f32 %v1109, %v1181
      %v1328 = vsub.f32 %v1112, %v1181
      %v1329 = vsub.f32 %v1115, %v1181
      %v1330 = vsub.f32 %v1118, %v1181
      %v1331 = vsub.f32 %v1121, %v1181
      %v1332 = vsub.f32 %v1124, %v1181
      %v1333 = vsub.f32 %v1127, %v1181
      %v1334 = vsub.f32 %v1130, %v1181
      %v1335 = vsub.f32 %v1133, %v1181
      %v1336 = vsub.f32 %v1136, %v1181
      %v1337 = vmul.f32 %v1305, %v1303
      %v1338 = vmul.f32 %v1306, %v1303
      %v1339 = vmul.f32 %v1307, %v1303
      %v1340 = vmul.f32 %v1308, %v1303
      %v1341 = vmul.f32 %v1309, %v1303
      %v1342 = vmul.f32 %v1310, %v1303
      %v1343 = vmul.f32 %v1311, %v1303
      %v1344 = vmul.f32 %v1312, %v1303
      %v1345 = vmul.f32 %v1313, %v1303
      %v1346 = vmul.f32 %v1314, %v1303
      %v1347 = vmul.f32 %v1315, %v1303
      %v1348 = vmul.f32 %v1316, %v1303
      %v1349 = vmul.f32 %v1317, %v1303
      %v1350 = vmul.f32 %v1318, %v1303
      %v1351 = vmul.f32 %v1319, %v1303
      %v1352 = vmul.f32 %v1320, %v1303
      %v1353 = vmul.f32 %v1321, %v1304
      %v1354 = vmul.f32 %v1322, %v1304
      %v1355 = vmul.f32 %v1323, %v1304
      %v1356 = vmul.f32 %v1324, %v1304
      %v1357 = vmul.f32 %v1325, %v1304
      %v1358 = vmul.f32 %v1326, %v1304
      %v1359 = vmul.f32 %v1327, %v1304
      %v1360 = vmul.f32 %v1328, %v1304
      %v1361 = vmul.f32 %v1329, %v1304
      %v1362 = vmul.f32 %v1330, %v1304
      %v1363 = vmul.f32 %v1331, %v1304
      %v1364 = vmul.f32 %v1332, %v1304
      %v1365 = vmul.f32 %v1333, %v1304
      %v1366 = vmul.f32 %v1334, %v1304
      %v1367 = vmul.f32 %v1335, %v1304
      %v1368 = vmul.f32 %v1336, %v1304
      %v1369 = vmax.f32 %v1337, 0.0
      %v1370 = vmax.f32 %v1338, 0.0
      %v1371 = vmax.f32 %v1339, 0.0
      %v1372 = vmax.f32 %v1340, 0.0
      %v1373 = vmax.f32 %v1341, 0.0
      %v1374 = vmax.f32 %v1342, 0.0
      %v1375 = vmax.f32 %v1343, 0.0
      %v1376 = vmax.f32 %v1344, 0.0
      %v1377 = vmax.f32 %v1345, 0.0
      %v1378 = vmax.f32 %v1346, 0.0
      %v1379 = vmax.f32 %v1347, 0.0
      %v1380 = vmax.f32 %v1348, 0.0
      %v1381 = vmax.f32 %v1349, 0.0
      %v1382 = vmax.f32 %v1350, 0.0
      %v1383 = vmax.f32 %v1351, 0.0
      %v1384 = vmax.f32 %v1352, 0.0
      %v1385 = vmax.f32 %v1353, 0.0
      %v1386 = vmax.f32 %v1354, 0.0
      %v1387 = vmax.f32 %v1355, 0.0
      %v1388 = vmax.f32 %v1356, 0.0
      %v1389 = vmax.f32 %v1357, 0.0
      %v1390 = vmax.f32 %v1358, 0.0
      %v1391 = vmax.f32 %v1359, 0.0
      %v1392 = vmax.f32 %v1360, 0.0
      %v1393 = vmax.f32 %v1361, 0.0
      %v1394 = vmax.f32 %v1362, 0.0
      %v1395 = vmax.f32 %v1363, 0.0
      %v1396 = vmax.f32 %v1364, 0.0
      %v1397 = vmax.f32 %v1365, 0.0
      %v1398 = vmax.f32 %v1366, 0.0
      %v1399 = vmax.f32 %v1367, 0.0
      %v1400 = vmax.f32 %v1368, 0.0
      %v1401 = vadd.f32 %v571, %v1369
      %v1402 = vadd.f32 %v572, %v1370
      %v1403 = vadd.f32 %v573, %v1371
      %v1404 = vadd.f32 %v574, %v1372
      %v1405 = vadd.f32 %v575, %v1373
      %v1406 = vadd.f32 %v576, %v1374
      %v1407 = vadd.f32 %v577, %v1375
      %v1408 = vadd.f32 %v578, %v1376
      %v1409 = vadd.f32 %v579, %v1377
      %v1410 = vadd.f32 %v580, %v1378
      %v1411 = vadd.f32 %v581, %v1379
      %v1412 = vadd.f32 %v582, %v1380
      %v1413 = vadd.f32 %v583, %v1381
      %v1414 = vadd.f32 %v584, %v1382
      %v1415 = vadd.f32 %v585, %v1383
      %v1416 = vadd.f32 %v586, %v1384
      %v1417 = vadd.f32 %v587, %v1385
      %v1418 = vadd.f32 %v588, %v1386
      %v1419 = vadd.f32 %v589, %v1387
      %v1420 = vadd.f32 %v590, %v1388
      %v1421 = vadd.f32 %v591, %v1389
      %v1422 = vadd.f32 %v592, %v1390
      %v1423 = vadd.f32 %v593, %v1391
      %v1424 = vadd.f32 %v594, %v1392
      %v1425 = vadd.f32 %v595, %v1393
      %v1426 = vadd.f32 %v596, %v1394
      %v1427 = vadd.f32 %v597, %v1395
      %v1428 = vadd.f32 %v598, %v1396
      %v1429 = vadd.f32 %v599, %v1397
      %v1430 = vadd.f32 %v600, %v1398
      %v1431 = vadd.f32 %v601, %v1399
      %v1432 = vadd.f32 %v602, %v1400
      %1433 = vst [vmem:[#allocation2] sm:$0xff] %v1401
      %1434 = vst [vmem:[#allocation2 + $0x8] sm:$0xff] %v1402
      %1435 = vst [vmem:[#allocation2 + $0x10] sm:$0xff] %v1403
      %1436 = vst [vmem:[#allocation2 + $0x18] sm:$0xff] %v1404
      %1437 = vst [vmem:[#allocation2 + $0x20] sm:$0xff] %v1405
      %1438 = vst [vmem:[#allocation2 + $0x28] sm:$0xff] %v1406
      %1439 = vst [vmem:[#allocation2 + $0x30] sm:$0xff] %v1407
      %1440 = vst [vmem:[#allocation2 + $0x38] sm:$0xff] %v1408
      %1441 = vst [vmem:[#allocation2 + $0x40] sm:$0xff] %v1409
      %1442 = vst [vmem:[#allocation2 + $0x48] sm:$0xff] %v1410
      %1443 = vst [vmem:[#allocation2 + $0x50] sm:$0xff] %v1411
      %1444 = vst [vmem:[#allocation2 + $0x58] sm:$0xff] %v1412
      %1445 = vst [vmem:[#allocation2 + $0x60] sm:$0xff] %v1413
      %1446 = vst [vmem:[#allocation2 + $0x68] sm:$0xff] %v1414
      %1447 = vst [vmem:[#allocation2 + $0x70] sm:$0xff] %v1415
      %1448 = vst [vmem:[#allocation2 + $0x78] sm:$0xff] %v1416
      %1449 = vst [vmem:[#allocation2 + $0x80] sm:$0xff] %v1417
      %1450 = vst [vmem:[#allocation2 + $0x88] sm:$0xff] %v1418
      %1451 = vst [vmem:[#allocation2 + $0x90] sm:$0xff] %v1419
      %1452 = vst [vmem:[#allocation2 + $0x98] sm:$0xff] %v1420
      %1453 = vst [vmem:[#allocation2 + $0xa0] sm:$0xff] %v1421
      %1454 = vst [vmem:[#allocation2 + $0xa8] sm:$0xff] %v1422
      %1455 = vst [vmem:[#allocation2 + $0xb0] sm:$0xff] %v1423
      %1456 = vst [vmem:[#allocation2 + $0xb8] sm:$0xff] %v1424
      %1457 = vst [vmem:[#allocation2 + $0xc0] sm:$0xff] %v1425
      %1458 = vst [vmem:[#allocation2 + $0xc8] sm:$0xff] %v1426
      %1459 = vst [vmem:[#allocation2 + $0xd0] sm:$0xff] %v1427
      %1460 = vst [vmem:[#allocation2 + $0xd8] sm:$0xff] %v1428
      %1461 = vst [vmem:[#allocation2 + $0xe0] sm:$0xff] %v1429
      %1462 = vst [vmem:[#allocation2 + $0xe8] sm:$0xff] %v1430
      %1463 = vst [vmem:[#allocation2 + $0xf0] sm:$0xff] %v1431
      %1464 = vst [vmem:[#allocation2 + $0xf8] sm:$0xff] %v1432
      %p1465 = scmp.eq.s32.totalorder %s18, 2
      // Predicated region
      $region53: #{anglenet_pallas.1} parent=47 // pred_check
        %p1466 = pneg %p1465
      $region54: #{anglenet_pallas.1} parent=47 // pred_check_branch
        %1468 = sbr.rel (%p1466) target = $region56
      $region55: #{anglenet_pallas.1} parent=47 // pred_region
        %v1469 = vld [vmem:[#allocation2] sm:$0xff]
        %v1470 = vld [vmem:[#allocation2 + $0x8] sm:$0xff]
        %v1471 = vld [vmem:[#allocation2 + $0x10] sm:$0xff]
        %v1472 = vld [vmem:[#allocation2 + $0x18] sm:$0xff]
        %v1473 = vld [vmem:[#allocation2 + $0x20] sm:$0xff]
        %v1474 = vld [vmem:[#allocation2 + $0x28] sm:$0xff]
        %v1475 = vld [vmem:[#allocation2 + $0x30] sm:$0xff]
        %v1476 = vld [vmem:[#allocation2 + $0x38] sm:$0xff]
        %v1477 = vld [vmem:[#allocation2 + $0x40] sm:$0xff]
        %v1478 = vld [vmem:[#allocation2 + $0x48] sm:$0xff]
        %v1479 = vld [vmem:[#allocation2 + $0x50] sm:$0xff]
        %v1480 = vld [vmem:[#allocation2 + $0x58] sm:$0xff]
        %v1481 = vld [vmem:[#allocation2 + $0x60] sm:$0xff]
        %v1482 = vld [vmem:[#allocation2 + $0x68] sm:$0xff]
        %v1483 = vld [vmem:[#allocation2 + $0x70] sm:$0xff]
        %v1484 = vld [vmem:[#allocation2 + $0x78] sm:$0xff]
        %v1485 = vld [vmem:[#allocation2 + $0x80] sm:$0xff]
        %v1486 = vld [vmem:[#allocation2 + $0x88] sm:$0xff]
        %v1487 = vld [vmem:[#allocation2 + $0x90] sm:$0xff]
        %v1488 = vld [vmem:[#allocation2 + $0x98] sm:$0xff]
        %v1489 = vld [vmem:[#allocation2 + $0xa0] sm:$0xff]
        %v1490 = vld [vmem:[#allocation2 + $0xa8] sm:$0xff]
        %v1491 = vld [vmem:[#allocation2 + $0xb0] sm:$0xff]
        %v1492 = vld [vmem:[#allocation2 + $0xb8] sm:$0xff]
        %v1493 = vld [vmem:[#allocation2 + $0xc0] sm:$0xff]
        %v1494 = vld [vmem:[#allocation2 + $0xc8] sm:$0xff]
        %v1495 = vld [vmem:[#allocation2 + $0xd0] sm:$0xff]
        %v1496 = vld [vmem:[#allocation2 + $0xd8] sm:$0xff]
        %v1497 = vld [vmem:[#allocation2 + $0xe0] sm:$0xff]
        %v1498 = vld [vmem:[#allocation2 + $0xe8] sm:$0xff]
        %v1499 = vld [vmem:[#allocation2 + $0xf0] sm:$0xff]
        %v1500 = vld [vmem:[#allocation2 + $0xf8] sm:$0xff]
        %v1501 = vld [vmem:[%s5] sm:$0xff]
        %v1502 = vld [vmem:[%s5 + $0x8] sm:$0xff]
        %v1503 = vld [vmem:[%s5 + $0x10] sm:$0xff]
        %v1504 = vld [vmem:[%s5 + $0x18] sm:$0xff]
        %v1505 = vld [vmem:[%s5 + $0x20] sm:$0xff]
        %v1506 = vld [vmem:[%s5 + $0x28] sm:$0xff]
        %v1507 = vld [vmem:[%s5 + $0x30] sm:$0xff]
        %v1508 = vld [vmem:[%s5 + $0x38] sm:$0xff]
        %v1509 = vld [vmem:[%s5 + $0x40] sm:$0xff]
        %v1510 = vld [vmem:[%s5 + $0x48] sm:$0xff]
        %v1511 = vld [vmem:[%s5 + $0x50] sm:$0xff]
        %v1512 = vld [vmem:[%s5 + $0x58] sm:$0xff]
        %v1513 = vld [vmem:[%s5 + $0x60] sm:$0xff]
        %v1514 = vld [vmem:[%s5 + $0x68] sm:$0xff]
        %v1515 = vld [vmem:[%s5 + $0x70] sm:$0xff]
        %v1516 = vld [vmem:[%s5 + $0x78] sm:$0xff]
        %v1517 = vld [vmem:[%s6] sm:$0x1]
        %v1519 = vperm.slane %v1517, 0
        %1521 = vmatpush.msra.mxu0 %v1516
        %1522 = vmatpush.msra.mxu0 %v1515
        %1523 = vmatpush.msra.mxu0 %v1514
        %1524 = vmatpush.msra.mxu0 %v1513
        %1525 = vmatpush.msra.mxu0 %v1512
        %1526 = vmatpush.msra.mxu0 %v1511
        %1527 = vmatpush.msra.mxu0 %v1510
        %1528 = vmatpush.msra.mxu0 %v1509
        %1529 = vmatpush.msra.mxu0 %v1508
        %1530 = vmatpush.msra.mxu0 %v1507
        %1531 = vmatpush.msra.mxu0 %v1506
        %1532 = vmatpush.msra.mxu0 %v1505
        %1533 = vmatpush.msra.mxu0 %v1504
        %1534 = vmatpush.msra.mxu0 %v1503
        %1535 = vmatpush.msra.mxu0 %v1502
        %1536 = vmatpush.msra.mxu0 %v1501
        %1537 = vmatmul.f32.gmra.mxu0 %v1469
        %v1538 = vpop.f32.mrf.mxu0
        %v1539 = vadd.f32 %v1519, %v1538
        %1540 = vmatmul.f32.gmra.mxu0 %v1470
        %v1541 = vpop.f32.mrf.mxu0
        %v1542 = vadd.f32 %v1519, %v1541
        %1543 = vmatmul.f32.gmra.mxu0 %v1471
        %v1544 = vpop.f32.mrf.mxu0
        %v1545 = vadd.f32 %v1519, %v1544
        %1546 = vmatmul.f32.gmra.mxu0 %v1472
        %v1547 = vpop.f32.mrf.mxu0
        %v1548 = vadd.f32 %v1519, %v1547
        %1549 = vmatmul.f32.gmra.mxu0 %v1473
        %v1550 = vpop.f32.mrf.mxu0
        %v1551 = vadd.f32 %v1519, %v1550
        %1552 = vmatmul.f32.gmra.mxu0 %v1474
        %v1553 = vpop.f32.mrf.mxu0
        %v1554 = vadd.f32 %v1519, %v1553
        %1555 = vmatmul.f32.gmra.mxu0 %v1475
        %v1556 = vpop.f32.mrf.mxu0
        %v1557 = vadd.f32 %v1519, %v1556
        %1558 = vmatmul.f32.gmra.mxu0 %v1476
        %v1559 = vpop.f32.mrf.mxu0
        %v1560 = vadd.f32 %v1519, %v1559
        %1561 = vmatmul.f32.gmra.mxu0 %v1477
        %v1562 = vpop.f32.mrf.mxu0
        %v1563 = vadd.f32 %v1519, %v1562
        %1564 = vmatmul.f32.gmra.mxu0 %v1478
        %v1565 = vpop.f32.mrf.mxu0
        %v1566 = vadd.f32 %v1519, %v1565
        %1567 = vmatmul.f32.gmra.mxu0 %v1479
        %v1568 = vpop.f32.mrf.mxu0
        %v1569 = vadd.f32 %v1519, %v1568
        %1570 = vmatmul.f32.gmra.mxu0 %v1480
        %v1571 = vpop.f32.mrf.mxu0
        %v1572 = vadd.f32 %v1519, %v1571
        %1573 = vmatmul.f32.gmra.mxu0 %v1481
        %v1574 = vpop.f32.mrf.mxu0
        %v1575 = vadd.f32 %v1519, %v1574
        %1576 = vmatmul.f32.gmra.mxu0 %v1482
        %v1577 = vpop.f32.mrf.mxu0
        %v1578 = vadd.f32 %v1519, %v1577
        %1579 = vmatmul.f32.gmra.mxu0 %v1483
        %v1580 = vpop.f32.mrf.mxu0
        %v1581 = vadd.f32 %v1519, %v1580
        %1582 = vmatmul.f32.gmra.mxu0 %v1484
        %v1583 = vpop.f32.mrf.mxu0
        %v1584 = vadd.f32 %v1519, %v1583
        %1585 = vmatmul.f32.gmra.mxu0 %v1485
        %v1586 = vpop.f32.mrf.mxu0
        %v1587 = vadd.f32 %v1519, %v1586
        %1588 = vmatmul.f32.gmra.mxu0 %v1486
        %v1589 = vpop.f32.mrf.mxu0
        %v1590 = vadd.f32 %v1519, %v1589
        %1591 = vmatmul.f32.gmra.mxu0 %v1487
        %v1592 = vpop.f32.mrf.mxu0
        %v1593 = vadd.f32 %v1519, %v1592
        %1594 = vmatmul.f32.gmra.mxu0 %v1488
        %v1595 = vpop.f32.mrf.mxu0
        %v1596 = vadd.f32 %v1519, %v1595
        %1597 = vmatmul.f32.gmra.mxu0 %v1489
        %v1598 = vpop.f32.mrf.mxu0
        %v1599 = vadd.f32 %v1519, %v1598
        %1600 = vmatmul.f32.gmra.mxu0 %v1490
        %v1601 = vpop.f32.mrf.mxu0
        %v1602 = vadd.f32 %v1519, %v1601
        %1603 = vmatmul.f32.gmra.mxu0 %v1491
        %v1604 = vpop.f32.mrf.mxu0
        %v1605 = vadd.f32 %v1519, %v1604
        %1606 = vmatmul.f32.gmra.mxu0 %v1492
        %v1607 = vpop.f32.mrf.mxu0
        %v1608 = vadd.f32 %v1519, %v1607
        %1609 = vmatmul.f32.gmra.mxu0 %v1493
        %v1610 = vpop.f32.mrf.mxu0
        %v1611 = vadd.f32 %v1519, %v1610
        %1612 = vmatmul.f32.gmra.mxu0 %v1494
        %v1613 = vpop.f32.mrf.mxu0
        %v1614 = vadd.f32 %v1519, %v1613
        %1615 = vmatmul.f32.gmra.mxu0 %v1495
        %v1616 = vpop.f32.mrf.mxu0
        %v1617 = vadd.f32 %v1519, %v1616
        %1618 = vmatmul.f32.gmra.mxu0 %v1496
        %v1619 = vpop.f32.mrf.mxu0
        %v1620 = vadd.f32 %v1519, %v1619
        %1621 = vmatmul.f32.gmra.mxu0 %v1497
        %v1622 = vpop.f32.mrf.mxu0
        %v1623 = vadd.f32 %v1519, %v1622
        %1624 = vmatmul.f32.gmra.mxu0 %v1498
        %v1625 = vpop.f32.mrf.mxu0
        %v1626 = vadd.f32 %v1519, %v1625
        %1627 = vmatmul.f32.gmra.mxu0 %v1499
        %v1628 = vpop.f32.mrf.mxu0
        %v1629 = vadd.f32 %v1519, %v1628
        %1630 = vmatmul.f32.gmra.mxu0 %v1500
        %v1631 = vpop.f32.mrf.mxu0
        %v1632 = vadd.f32 %v1519, %v1631
        %1633 = vdwg.mxu0
        %vm1634 = vcmask 72704
        %v1635 = vsel %vm1634, %v1539, -inf
        %1636 = vmax.xlane.f32.xlu0 %v1635
        %v1637 = vpop.xlane.xlu0 %1636
        %v1638 = vsel %vm1634, %v1542, -inf
        %1639 = vmax.xlane.f32.xlu0 %v1638
        %v1640 = vpop.xlane.xlu0 %1639
        %v1641 = vsel %vm1634, %v1545, -inf
        %1642 = vmax.xlane.f32.xlu0 %v1641
        %v1643 = vpop.xlane.xlu0 %1642
        %v1644 = vsel %vm1634, %v1548, -inf
        %1645 = vmax.xlane.f32.xlu0 %v1644
        %v1646 = vpop.xlane.xlu0 %1645
        %v1647 = vsel %vm1634, %v1551, -inf
        %1648 = vmax.xlane.f32.xlu0 %v1647
        %v1649 = vpop.xlane.xlu0 %1648
        %v1650 = vsel %vm1634, %v1554, -inf
        %1651 = vmax.xlane.f32.xlu0 %v1650
        %v1652 = vpop.xlane.xlu0 %1651
        %v1653 = vsel %vm1634, %v1557, -inf
        %1654 = vmax.xlane.f32.xlu0 %v1653
        %v1655 = vpop.xlane.xlu0 %1654
        %v1656 = vsel %vm1634, %v1560, -inf
        %1657 = vmax.xlane.f32.xlu0 %v1656
        %v1658 = vpop.xlane.xlu0 %1657
        %v1659 = vsel %vm1634, %v1563, -inf
        %1660 = vmax.xlane.f32.xlu0 %v1659
        %v1661 = vpop.xlane.xlu0 %1660
        %v1662 = vsel %vm1634, %v1566, -inf
        %1663 = vmax.xlane.f32.xlu0 %v1662
        %v1664 = vpop.xlane.xlu0 %1663
        %v1665 = vsel %vm1634, %v1569, -inf
        %1666 = vmax.xlane.f32.xlu0 %v1665
        %v1667 = vpop.xlane.xlu0 %1666
        %v1668 = vsel %vm1634, %v1572, -inf
        %1669 = vmax.xlane.f32.xlu0 %v1668
        %v1670 = vpop.xlane.xlu0 %1669
        %v1671 = vsel %vm1634, %v1575, -inf
        %1672 = vmax.xlane.f32.xlu0 %v1671
        %v1673 = vpop.xlane.xlu0 %1672
        %v1674 = vsel %vm1634, %v1578, -inf
        %1675 = vmax.xlane.f32.xlu0 %v1674
        %v1676 = vpop.xlane.xlu0 %1675
        %v1677 = vsel %vm1634, %v1581, -inf
        %1678 = vmax.xlane.f32.xlu0 %v1677
        %v1679 = vpop.xlane.xlu0 %1678
        %v1680 = vsel %vm1634, %v1584, -inf
        %1681 = vmax.xlane.f32.xlu0 %v1680
        %v1682 = vpop.xlane.xlu0 %1681
        %v1683 = vsel %vm1634, %v1587, -inf
        %1684 = vmax.xlane.f32.xlu0 %v1683
        %v1685 = vpop.xlane.xlu0 %1684
        %v1686 = vsel %vm1634, %v1590, -inf
        %1687 = vmax.xlane.f32.xlu0 %v1686
        %v1688 = vpop.xlane.xlu0 %1687
        %v1689 = vsel %vm1634, %v1593, -inf
        %1690 = vmax.xlane.f32.xlu0 %v1689
        %v1691 = vpop.xlane.xlu0 %1690
        %v1692 = vsel %vm1634, %v1596, -inf
        %1693 = vmax.xlane.f32.xlu0 %v1692
        %v1694 = vpop.xlane.xlu0 %1693
        %v1695 = vsel %vm1634, %v1599, -inf
        %1696 = vmax.xlane.f32.xlu0 %v1695
        %v1697 = vpop.xlane.xlu0 %1696
        %v1698 = vsel %vm1634, %v1602, -inf
        %1699 = vmax.xlane.f32.xlu0 %v1698
        %v1700 = vpop.xlane.xlu0 %1699
        %v1701 = vsel %vm1634, %v1605, -inf
        %1702 = vmax.xlane.f32.xlu0 %v1701
        %v1703 = vpop.xlane.xlu0 %1702
        %v1704 = vsel %vm1634, %v1608, -inf
        %1705 = vmax.xlane.f32.xlu0 %v1704
        %v1706 = vpop.xlane.xlu0 %1705
        %v1707 = vsel %vm1634, %v1611, -inf
        %1708 = vmax.xlane.f32.xlu0 %v1707
        %v1709 = vpop.xlane.xlu0 %1708
        %v1710 = vsel %vm1634, %v1614, -inf
        %1711 = vmax.xlane.f32.xlu0 %v1710
        %v1712 = vpop.xlane.xlu0 %1711
        %v1713 = vsel %vm1634, %v1617, -inf
        %1714 = vmax.xlane.f32.xlu0 %v1713
        %v1715 = vpop.xlane.xlu0 %1714
        %v1716 = vsel %vm1634, %v1620, -inf
        %1717 = vmax.xlane.f32.xlu0 %v1716
        %v1718 = vpop.xlane.xlu0 %1717
        %v1719 = vsel %vm1634, %v1623, -inf
        %1720 = vmax.xlane.f32.xlu0 %v1719
        %v1721 = vpop.xlane.xlu0 %1720
        %v1722 = vsel %vm1634, %v1626, -inf
        %1723 = vmax.xlane.f32.xlu0 %v1722
        %v1724 = vpop.xlane.xlu0 %1723
        %v1725 = vsel %vm1634, %v1629, -inf
        %1726 = vmax.xlane.f32.xlu0 %v1725
        %v1727 = vpop.xlane.xlu0 %1726
        %v1728 = vsel %vm1634, %v1632, -inf
        %1729 = vmax.xlane.f32.xlu0 %v1728
        %v1730 = vpop.xlane.xlu0 %1729
        %v1731 = vsub.f32 %v1539, %v1637
        %v1732 = vsub.f32 %v1542, %v1640
        %v1733 = vsub.f32 %v1545, %v1643
        %v1734 = vsub.f32 %v1548, %v1646
        %v1735 = vsub.f32 %v1551, %v1649
        %v1736 = vsub.f32 %v1554, %v1652
        %v1737 = vsub.f32 %v1557, %v1655
        %v1738 = vsub.f32 %v1560, %v1658
        %v1739 = vsub.f32 %v1563, %v1661
        %v1740 = vsub.f32 %v1566, %v1664
        %v1741 = vsub.f32 %v1569, %v1667
        %v1742 = vsub.f32 %v1572, %v1670
        %v1743 = vsub.f32 %v1575, %v1673
        %v1744 = vsub.f32 %v1578, %v1676
        %v1745 = vsub.f32 %v1581, %v1679
        %v1746 = vsub.f32 %v1584, %v1682
        %v1747 = vsub.f32 %v1587, %v1685
        %v1748 = vsub.f32 %v1590, %v1688
        %v1749 = vsub.f32 %v1593, %v1691
        %v1750 = vsub.f32 %v1596, %v1694
        %v1751 = vsub.f32 %v1599, %v1697
        %v1752 = vsub.f32 %v1602, %v1700
        %v1753 = vsub.f32 %v1605, %v1703
        %v1754 = vsub.f32 %v1608, %v1706
        %v1755 = vsub.f32 %v1611, %v1709
        %v1756 = vsub.f32 %v1614, %v1712
        %v1757 = vsub.f32 %v1617, %v1715
        %v1758 = vsub.f32 %v1620, %v1718
        %v1759 = vsub.f32 %v1623, %v1721
        %v1760 = vsub.f32 %v1626, %v1724
        %v1761 = vsub.f32 %v1629, %v1727
        %v1762 = vsub.f32 %v1632, %v1730
        %v1763 = vmul.f32 %v1731, 1.442695
        %v1764 = vpow.pop %v1763
        %v1765 = vmul.f32 %v1732, 1.442695
        %v1766 = vpow.pop %v1765
        %v1767 = vmul.f32 %v1733, 1.442695
        %v1768 = vpow.pop %v1767
        %v1769 = vmul.f32 %v1734, 1.442695
        %v1770 = vpow.pop %v1769
        %v1771 = vmul.f32 %v1735, 1.442695
        %v1772 = vpow.pop %v1771
        %v1773 = vmul.f32 %v1736, 1.442695
        %v1774 = vpow.pop %v1773
        %v1775 = vmul.f32 %v1737, 1.442695
        %v1776 = vpow.pop %v1775
        %v1777 = vmul.f32 %v1738, 1.442695
        %v1778 = vpow.pop %v1777
        %v1779 = vmul.f32 %v1739, 1.442695
        %v1780 = vpow.pop %v1779
        %v1781 = vmul.f32 %v1740, 1.442695
        %v1782 = vpow.pop %v1781
        %v1783 = vmul.f32 %v1741, 1.442695
        %v1784 = vpow.pop %v1783
        %v1785 = vmul.f32 %v1742, 1.442695
        %v1786 = vpow.pop %v1785
        %v1787 = vmul.f32 %v1743, 1.442695
        %v1788 = vpow.pop %v1787
        %v1789 = vmul.f32 %v1744, 1.442695
        %v1790 = vpow.pop %v1789
        %v1791 = vmul.f32 %v1745, 1.442695
        %v1792 = vpow.pop %v1791
        %v1793 = vmul.f32 %v1746, 1.442695
        %v1794 = vpow.pop %v1793
        %v1795 = vmul.f32 %v1747, 1.442695
        %v1796 = vpow.pop %v1795
        %v1797 = vmul.f32 %v1748, 1.442695
        %v1798 = vpow.pop %v1797
        %v1799 = vmul.f32 %v1749, 1.442695
        %v1800 = vpow.pop %v1799
        %v1801 = vmul.f32 %v1750, 1.442695
        %v1802 = vpow.pop %v1801
        %v1803 = vmul.f32 %v1751, 1.442695
        %v1804 = vpow.pop %v1803
        %v1805 = vmul.f32 %v1752, 1.442695
        %v1806 = vpow.pop %v1805
        %v1807 = vmul.f32 %v1753, 1.442695
        %v1808 = vpow.pop %v1807
        %v1809 = vmul.f32 %v1754, 1.442695
        %v1810 = vpow.pop %v1809
        %v1811 = vmul.f32 %v1755, 1.442695
        %v1812 = vpow.pop %v1811
        %v1813 = vmul.f32 %v1756, 1.442695
        %v1814 = vpow.pop %v1813
        %v1815 = vmul.f32 %v1757, 1.442695
        %v1816 = vpow.pop %v1815
        %v1817 = vmul.f32 %v1758, 1.442695
        %v1818 = vpow.pop %v1817
        %v1819 = vmul.f32 %v1759, 1.442695
        %v1820 = vpow.pop %v1819
        %v1821 = vmul.f32 %v1760, 1.442695
        %v1822 = vpow.pop %v1821
        %v1823 = vmul.f32 %v1761, 1.442695
        %v1824 = vpow.pop %v1823
        %v1825 = vmul.f32 %v1762, 1.442695
        %v1826 = vpow.pop %v1825
        %v1827 = vsel %vm1634, %v1764, 0.0
        %1828 = vadd.xlane.f32.xlu0 %v1827
        %v1829 = vpop.xlane.xlu0 %1828
        %v1830 = vsel %vm1634, %v1766, 0.0
        %1831 = vadd.xlane.f32.xlu0 %v1830
        %v1832 = vpop.xlane.xlu0 %1831
        %v1833 = vsel %vm1634, %v1768, 0.0
        %1834 = vadd.xlane.f32.xlu0 %v1833
        %v1835 = vpop.xlane.xlu0 %1834
        %v1836 = vsel %vm1634, %v1770, 0.0
        %1837 = vadd.xlane.f32.xlu0 %v1836
        %v1838 = vpop.xlane.xlu0 %1837
        %v1839 = vsel %vm1634, %v1772, 0.0
        %1840 = vadd.xlane.f32.xlu0 %v1839
        %v1841 = vpop.xlane.xlu0 %1840
        %v1842 = vsel %vm1634, %v1774, 0.0
        %1843 = vadd.xlane.f32.xlu0 %v1842
        %v1844 = vpop.xlane.xlu0 %1843
        %v1845 = vsel %vm1634, %v1776, 0.0
        %1846 = vadd.xlane.f32.xlu0 %v1845
        %v1847 = vpop.xlane.xlu0 %1846
        %v1848 = vsel %vm1634, %v1778, 0.0
        %1849 = vadd.xlane.f32.xlu0 %v1848
        %v1850 = vpop.xlane.xlu0 %1849
        %v1851 = vsel %vm1634, %v1780, 0.0
        %1852 = vadd.xlane.f32.xlu0 %v1851
        %v1853 = vpop.xlane.xlu0 %1852
        %v1854 = vsel %vm1634, %v1782, 0.0
        %1855 = vadd.xlane.f32.xlu0 %v1854
        %v1856 = vpop.xlane.xlu0 %1855
        %v1857 = vsel %vm1634, %v1784, 0.0
        %1858 = vadd.xlane.f32.xlu0 %v1857
        %v1859 = vpop.xlane.xlu0 %1858
        %v1860 = vsel %vm1634, %v1786, 0.0
        %1861 = vadd.xlane.f32.xlu0 %v1860
        %v1862 = vpop.xlane.xlu0 %1861
        %v1863 = vsel %vm1634, %v1788, 0.0
        %1864 = vadd.xlane.f32.xlu0 %v1863
        %v1865 = vpop.xlane.xlu0 %1864
        %v1866 = vsel %vm1634, %v1790, 0.0
        %1867 = vadd.xlane.f32.xlu0 %v1866
        %v1868 = vpop.xlane.xlu0 %1867
        %v1869 = vsel %vm1634, %v1792, 0.0
        %1870 = vadd.xlane.f32.xlu0 %v1869
        %v1871 = vpop.xlane.xlu0 %1870
        %v1872 = vsel %vm1634, %v1794, 0.0
        %1873 = vadd.xlane.f32.xlu0 %v1872
        %v1874 = vpop.xlane.xlu0 %1873
        %v1875 = vsel %vm1634, %v1796, 0.0
        %1876 = vadd.xlane.f32.xlu0 %v1875
        %v1877 = vpop.xlane.xlu0 %1876
        %v1878 = vsel %vm1634, %v1798, 0.0
        %1879 = vadd.xlane.f32.xlu0 %v1878
        %v1880 = vpop.xlane.xlu0 %1879
        %v1881 = vsel %vm1634, %v1800, 0.0
        %1882 = vadd.xlane.f32.xlu0 %v1881
        %v1883 = vpop.xlane.xlu0 %1882
        %v1884 = vsel %vm1634, %v1802, 0.0
        %1885 = vadd.xlane.f32.xlu0 %v1884
        %v1886 = vpop.xlane.xlu0 %1885
        %v1887 = vsel %vm1634, %v1804, 0.0
        %1888 = vadd.xlane.f32.xlu0 %v1887
        %v1889 = vpop.xlane.xlu0 %1888
        %v1890 = vsel %vm1634, %v1806, 0.0
        %1891 = vadd.xlane.f32.xlu0 %v1890
        %v1892 = vpop.xlane.xlu0 %1891
        %v1893 = vsel %vm1634, %v1808, 0.0
        %1894 = vadd.xlane.f32.xlu0 %v1893
        %v1895 = vpop.xlane.xlu0 %1894
        %v1896 = vsel %vm1634, %v1810, 0.0
        %1897 = vadd.xlane.f32.xlu0 %v1896
        %v1898 = vpop.xlane.xlu0 %1897
        %v1899 = vsel %vm1634, %v1812, 0.0
        %1900 = vadd.xlane.f32.xlu0 %v1899
        %v1901 = vpop.xlane.xlu0 %1900
        %v1902 = vsel %vm1634, %v1814, 0.0
        %1903 = vadd.xlane.f32.xlu0 %v1902
        %v1904 = vpop.xlane.xlu0 %1903
        %v1905 = vsel %vm1634, %v1816, 0.0
        %1906 = vadd.xlane.f32.xlu0 %v1905
        %v1907 = vpop.xlane.xlu0 %1906
        %v1908 = vsel %vm1634, %v1818, 0.0
        %1909 = vadd.xlane.f32.xlu0 %v1908
        %v1910 = vpop.xlane.xlu0 %1909
        %v1911 = vsel %vm1634, %v1820, 0.0
        %1912 = vadd.xlane.f32.xlu0 %v1911
        %v1913 = vpop.xlane.xlu0 %1912
        %v1914 = vsel %vm1634, %v1822, 0.0
        %1915 = vadd.xlane.f32.xlu0 %v1914
        %v1916 = vpop.xlane.xlu0 %1915
        %v1917 = vsel %vm1634, %v1824, 0.0
        %1918 = vadd.xlane.f32.xlu0 %v1917
        %v1919 = vpop.xlane.xlu0 %1918
        %v1920 = vsel %vm1634, %v1826, 0.0
        %1921 = vadd.xlane.f32.xlu0 %v1920
        %v1922 = vpop.xlane.xlu0 %1921
        %v1923 = vlog2.pop %v1829
        %v1924 = vmul.f32 %v1923, 0.6931472
        %v1925 = vlog2.pop %v1832
        %v1926 = vmul.f32 %v1925, 0.6931472
        %v1927 = vlog2.pop %v1835
        %v1928 = vmul.f32 %v1927, 0.6931472
        %v1929 = vlog2.pop %v1838
        %v1930 = vmul.f32 %v1929, 0.6931472
        %v1931 = vlog2.pop %v1841
        %v1932 = vmul.f32 %v1931, 0.6931472
        %v1933 = vlog2.pop %v1844
        %v1934 = vmul.f32 %v1933, 0.6931472
        %v1935 = vlog2.pop %v1847
        %v1936 = vmul.f32 %v1935, 0.6931472
        %v1937 = vlog2.pop %v1850
        %v1938 = vmul.f32 %v1937, 0.6931472
        %v1939 = vlog2.pop %v1853
        %v1940 = vmul.f32 %v1939, 0.6931472
        %v1941 = vlog2.pop %v1856
        %v1942 = vmul.f32 %v1941, 0.6931472
        %v1943 = vlog2.pop %v1859
        %v1944 = vmul.f32 %v1943, 0.6931472
        %v1945 = vlog2.pop %v1862
        %v1946 = vmul.f32 %v1945, 0.6931472
        %v1947 = vlog2.pop %v1865
        %v1948 = vmul.f32 %v1947, 0.6931472
        %v1949 = vlog2.pop %v1868
        %v1950 = vmul.f32 %v1949, 0.6931472
        %v1951 = vlog2.pop %v1871
        %v1952 = vmul.f32 %v1951, 0.6931472
        %v1953 = vlog2.pop %v1874
        %v1954 = vmul.f32 %v1953, 0.6931472
        %v1955 = vlog2.pop %v1877
        %v1956 = vmul.f32 %v1955, 0.6931472
        %v1957 = vlog2.pop %v1880
        %v1958 = vmul.f32 %v1957, 0.6931472
        %v1959 = vlog2.pop %v1883
        %v1960 = vmul.f32 %v1959, 0.6931472
        %v1961 = vlog2.pop %v1886
        %v1962 = vmul.f32 %v1961, 0.6931472
        %v1963 = vlog2.pop %v1889
        %v1964 = vmul.f32 %v1963, 0.6931472
        %v1965 = vlog2.pop %v1892
        %v1966 = vmul.f32 %v1965, 0.6931472
        %v1967 = vlog2.pop %v1895
        %v1968 = vmul.f32 %v1967, 0.6931472
        %v1969 = vlog2.pop %v1898
        %v1970 = vmul.f32 %v1969, 0.6931472
        %v1971 = vlog2.pop %v1901
        %v1972 = vmul.f32 %v1971, 0.6931472
        %v1973 = vlog2.pop %v1904
        %v1974 = vmul.f32 %v1973, 0.6931472
        %v1975 = vlog2.pop %v1907
        %v1976 = vmul.f32 %v1975, 0.6931472
        %v1977 = vlog2.pop %v1910
        %v1978 = vmul.f32 %v1977, 0.6931472
        %v1979 = vlog2.pop %v1913
        %v1980 = vmul.f32 %v1979, 0.6931472
        %v1981 = vlog2.pop %v1916
        %v1982 = vmul.f32 %v1981, 0.6931472
        %v1983 = vlog2.pop %v1919
        %v1984 = vmul.f32 %v1983, 0.6931472
        %v1985 = vlog2.pop %v1922
        %v1986 = vmul.f32 %v1985, 0.6931472
        %v1987 = vsub.f32 %v1731, %v1924
        %v1988 = vsub.f32 %v1732, %v1926
        %v1989 = vsub.f32 %v1733, %v1928
        %v1990 = vsub.f32 %v1734, %v1930
        %v1991 = vsub.f32 %v1735, %v1932
        %v1992 = vsub.f32 %v1736, %v1934
        %v1993 = vsub.f32 %v1737, %v1936
        %v1994 = vsub.f32 %v1738, %v1938
        %v1995 = vsub.f32 %v1739, %v1940
        %v1996 = vsub.f32 %v1740, %v1942
        %v1997 = vsub.f32 %v1741, %v1944
        %v1998 = vsub.f32 %v1742, %v1946
        %v1999 = vsub.f32 %v1743, %v1948
        %v2000 = vsub.f32 %v1744, %v1950
        %v2001 = vsub.f32 %v1745, %v1952
        %v2002 = vsub.f32 %v1746, %v1954
        %v2003 = vsub.f32 %v1747, %v1956
        %v2004 = vsub.f32 %v1748, %v1958
        %v2005 = vsub.f32 %v1749, %v1960
        %v2006 = vsub.f32 %v1750, %v1962
        %v2007 = vsub.f32 %v1751, %v1964
        %v2008 = vsub.f32 %v1752, %v1966
        %v2009 = vsub.f32 %v1753, %v1968
        %v2010 = vsub.f32 %v1754, %v1970
        %v2011 = vsub.f32 %v1755, %v1972
        %v2012 = vsub.f32 %v1756, %v1974
        %v2013 = vsub.f32 %v1757, %v1976
        %v2014 = vsub.f32 %v1758, %v1978
        %v2015 = vsub.f32 %v1759, %v1980
        %v2016 = vsub.f32 %v1760, %v1982
        %v2017 = vsub.f32 %v1761, %v1984
        %v2018 = vsub.f32 %v1762, %v1986
        %2019 = vst.msk [vmem:[%s7] sm:$0xff] %vm1634, %v1987
        %2020 = vst.msk [vmem:[%s7 + $0x8] sm:$0xff] %vm1634, %v1988
        %2021 = vst.msk [vmem:[%s7 + $0x10] sm:$0xff] %vm1634, %v1989
        %2022 = vst.msk [vmem:[%s7 + $0x18] sm:$0xff] %vm1634, %v1990
        %2023 = vst.msk [vmem:[%s7 + $0x20] sm:$0xff] %vm1634, %v1991
        %2024 = vst.msk [vmem:[%s7 + $0x28] sm:$0xff] %vm1634, %v1992
        %2025 = vst.msk [vmem:[%s7 + $0x30] sm:$0xff] %vm1634, %v1993
        %2026 = vst.msk [vmem:[%s7 + $0x38] sm:$0xff] %vm1634, %v1994
        %2027 = vst.msk [vmem:[%s7 + $0x40] sm:$0xff] %vm1634, %v1995
        %2028 = vst.msk [vmem:[%s7 + $0x48] sm:$0xff] %vm1634, %v1996
        %2029 = vst.msk [vmem:[%s7 + $0x50] sm:$0xff] %vm1634, %v1997
        %2030 = vst.msk [vmem:[%s7 + $0x58] sm:$0xff] %vm1634, %v1998
        %2031 = vst.msk [vmem:[%s7 + $0x60] sm:$0xff] %vm1634, %v1999
        %2032 = vst.msk [vmem:[%s7 + $0x68] sm:$0xff] %vm1634, %v2000
        %2033 = vst.msk [vmem:[%s7 + $0x70] sm:$0xff] %vm1634, %v2001
        %2034 = vst.msk [vmem:[%s7 + $0x78] sm:$0xff] %vm1634, %v2002
        %2035 = vst.msk [vmem:[%s7 + $0x80] sm:$0xff] %vm1634, %v2003
        %2036 = vst.msk [vmem:[%s7 + $0x88] sm:$0xff] %vm1634, %v2004
        %2037 = vst.msk [vmem:[%s7 + $0x90] sm:$0xff] %vm1634, %v2005
        %2038 = vst.msk [vmem:[%s7 + $0x98] sm:$0xff] %vm1634, %v2006
        %2039 = vst.msk [vmem:[%s7 + $0xa0] sm:$0xff] %vm1634, %v2007
        %2040 = vst.msk [vmem:[%s7 + $0xa8] sm:$0xff] %vm1634, %v2008
        %2041 = vst.msk [vmem:[%s7 + $0xb0] sm:$0xff] %vm1634, %v2009
        %2042 = vst.msk [vmem:[%s7 + $0xb8] sm:$0xff] %vm1634, %v2010
        %2043 = vst.msk [vmem:[%s7 + $0xc0] sm:$0xff] %vm1634, %v2011
        %2044 = vst.msk [vmem:[%s7 + $0xc8] sm:$0xff] %vm1634, %v2012
        %2045 = vst.msk [vmem:[%s7 + $0xd0] sm:$0xff] %vm1634, %v2013
        %2046 = vst.msk [vmem:[%s7 + $0xd8] sm:$0xff] %vm1634, %v2014
        %2047 = vst.msk [vmem:[%s7 + $0xe0] sm:$0xff] %vm1634, %v2015
        %2048 = vst.msk [vmem:[%s7 + $0xe8] sm:$0xff] %vm1634, %v2016
        %2049 = vst.msk [vmem:[%s7 + $0xf0] sm:$0xff] %vm1634, %v2017
        %2050 = vst.msk [vmem:[%s7 + $0xf8] sm:$0xff] %vm1634, %v2018
      $region56: #{anglenet_pallas.1} parent=47 // pred_fallthru
        _
      // Predicated region
      $region57: #{anglenet_pallas.1} parent=47 // pred_check
        %p2051 = pneg %p188
      $region58: #{anglenet_pallas.1} parent=47 // pred_check_branch
        %2053 = sbr.rel (%p2051) target = $region60
      $region59: #{anglenet_pallas.1} parent=47 // pred_region
        _
      $region60: #{anglenet_pallas.1} parent=47 // pred_fallthru
        _
      // Predicated region
      $region61: #{anglenet_pallas.1} parent=47 // pred_check
        %p2054 = pneg %p188
      $region62: #{anglenet_pallas.1} parent=47 // pred_check_branch
        %2056 = sbr.rel (%p2054) target = $region64
      $region63: #{anglenet_pallas.1} parent=47 // pred_region
        _
      $region64: #{anglenet_pallas.1} parent=47 // pred_fallthru
        _
    $region48: #{anglenet_pallas.1} parent=5 // pred_fallthru
      _
    %p2057 = scmp.le.s32.totalorder 2, %s13
    // Predicated region
    $region65: #{anglenet_pallas.1} parent=5 // pred_check
      %p2058 = pneg %p2057
    $region66: #{anglenet_pallas.1} parent=5 // pred_check_branch
      %2060 = sbr.rel (%p2058) target = $region68
    $region67: #{anglenet_pallas.1} parent=5 // pred_region
      %s2061 = ssub.s32 %s13, 2
    $region68: #{anglenet_pallas.1} parent=5 // pred_fallthru
      _
  $region6: #{anglenet_pallas.1} parent=0 // loop_footer
    %s17 = sadd.s32 1, %s13
  $region7: #{anglenet_pallas.1} parent=0 // loop_footer_branch
    %12 = sbr.rel target = $region3
  $region8: #{anglenet_pallas.1} parent=0 // loop_exit
    _

</llo_original>
